<compile_context>
chip_gen: v6e
topology: v6e:2x2x1
jax: 0.10.0
libtpu: 0.0.40
codegen_flags: <defaults>
</compile_context>

<pallas_src>
import functools
import math

import jax
import jax.numpy as jnp
import numpy as np
from jax import lax
from jax.experimental import pallas as pl
from jax.experimental.pallas import tpu as pltpu


# ----------------------------- Pallas kernel --------------------------------


def _tc_block_kernel(pos_ref, x_ref, wa_ref, wb_ref, b_ref, o_ref, xs_ref, *,
                     dilations, offsets, c_in, f):
    """All DenseBlock layers fused, for one batch element.

    Layout: channels on sublanes, time on lanes.

    pos_ref : (1, T)         i32  steps since current episode start
    x_ref   : (1, C_in, T)   f32  input block (one batch element)
    wa_ref  : (2F, K_sum)    bf16 ragged-packed fused [conv1;conv2] tap on x[t-d]
    wb_ref  : (2F, K_sum)    bf16 ragged-packed fused [conv1;conv2] tap on x[t]
    b_ref   : (L*2F, 1)      f32  fused biases
    o_ref   : (1, C_out, T)  f32  compact dense-concat output (== working slab)
    xs_ref  : (C_out, T)     bf16 shadow of the slab (matmul operands)
    """
    x = x_ref[0]                                   # (C_in, T) f32
    o_ref[0, :c_in, :] = x
    xs_ref[:c_in, :] = x.astype(jnp.bfloat16)
    pos = pos_ref[...]                             # (1, T) i32

    for l, (d, off) in enumerate(zip(dilations, offsets)):   # static unroll
        k_l = c_in + l * f                         # channels visible to layer l

        # Shifted tap x[t-d]: 32-bit lane rotate (XLU, free slot) of the f32
        # slab, then a single bf16 cast of the rolled operand.
        # TODO(synk): roll the bf16 shadow directly once packed-dtype lane
        # rotates are confirmed; saves the f32 re-read + this cast.
        x_sft = pltpu.roll(o_ref[0, :k_l, :], shift=d, axis=1)
        x_sft = x_sft.astype(jnp.bfloat16)         # (k_l, T) bf16
        x_cur = xs_ref[:k_l, :]                    # (k_l, T) bf16, no re-cast

        # Fused (conv1 | conv2) matmuls: bf16 operands, f32 MXU accumulation.
        wa = wa_ref[:, off:off + k_l]              # (2F, k_l)
        wb = wb_ref[:, off:off + k_l]
        ya = jnp.dot(wa, x_sft, preferred_element_type=jnp.float32)   # (2F, T)
        yb = jnp.dot(wb, x_cur, preferred_element_type=jnp.float32)

        # Episode/causality mask applied AFTER the shifted-tap dot (per-
        # timestep scale commutes with the channel contraction).  Applied to
        # the shifted-tap term only — never to the Wb term or the bias.
        # pos >= d  <=>  the d-step look-back stays inside the episode/sequence
        # (== the per-episode ConstantPad1d((d, 0), 0) zero region).
        mask = (pos >= d).astype(jnp.float32)      # (1, T)
        y = ya * mask + yb + b_ref[2 * f * l:2 * f * (l + 1), :]   # (2F, T)

        # tanh/sigmoid over only the real F rows (EUP work = 2*F*T).
        act = jnp.tanh(y[:f, :]) * jax.nn.sigmoid(y[f:, :])        # (F, T)

        # Full-lane-width stores of only the F new channels, compact layout.
        o_ref[0, k_l:k_l + f, :] = act
        xs_ref[k_l:k_l + f, :] = act.astype(jnp.bfloat16)


# -------------------------------- wrapper ------------------------------------


def tc_block_forward(x_nct, frame_no, packed):
    """x_nct: (N, C_in, T) f32 (PyTorch Conv1d layout). frame_no: (T,) int."""
    wa, wb, bb, meta = packed
    c_in, f, n_layers, dilations, offsets = meta
    n, c, t_len = x_nct.shape
    assert c == c_in
    c_out = c_in + n_layers * f

    x = x_nct.astype(jnp.float32)

    # Steps since the most recent episode start (frame_no == 1 restarts; the
    # sequence start counts).  One (1, T) i32 row replaces the old lane-padded
    # (L, T, 1) mask stack.
    t_idx = jnp.arange(t_len, dtype=jnp.int32)
    last_start = lax.cummax(jnp.where(frame_no == 1, t_idx, 0), axis=0)
    pos = (t_idx - last_start)[None, :].astype(jnp.int32)          # (1, T)

    kernel = functools.partial(_tc_block_kernel, dilations=tuple(dilations),
                               offsets=tuple(offsets), c_in=c_in, f=f)

    # Explicit VMEM budget (v5e default scoped limit is only 16 MiB): the
    # pipelined x/out blocks are double-buffered; weights/pos/bias are tiny
    # after de-padding, so their default double-buffering costs ~nothing.
    est = (2 * (c_in + c_out) * t_len * 4          # x + out blocks (x2 buffers)
           + c_out * t_len * 2                     # bf16 shadow scratch
           + 2 * (wa.size + wb.size) * 2           # ragged bf16 weights (x2)
           + 2 * bb.shape[0] * 128 * 4             # bias (last dim lane-pads)
           + 2 * 8 * t_len * 4)                    # pos row (sublane-pads to 8)
    vmem_limit = int(min(100 << 20, max(32 << 20, 2 * est)))

    return pl.pallas_call(
        kernel,
        out_shape=jax.ShapeDtypeStruct((n, c_out, t_len), jnp.float32),
        grid=(n,),
        in_specs=[
            pl.BlockSpec((1, t_len), lambda i: (0, 0)),             # pos
            pl.BlockSpec((1, c_in, t_len), lambda i: (i, 0, 0)),    # x
            pl.BlockSpec(wa.shape, lambda i: (0, 0)),               # Wa
            pl.BlockSpec(wb.shape, lambda i: (0, 0)),               # Wb
            pl.BlockSpec(bb.shape, lambda i: (0, 0)),               # bias
        ],
        out_specs=pl.BlockSpec((1, c_out, t_len), lambda i: (i, 0, 0)),
        scratch_shapes=[pltpu.VMEM((c_out, t_len), jnp.bfloat16)],
        compiler_params=pltpu.CompilerParams(
            dimension_semantics=("parallel",),
            vmem_limit_bytes=vmem_limit),
    )(pos, x, wa, wb, bb)


# ------------------------------ TCBlock glue ---------------------------------


class TCBlockPallas:
    """Pallas implementation of TCBlock (InferenceMode.NONE semantics)."""

    def __init__(self, seq_len, input_size, filter_size, key):
        self.input_size = input_size
        self.filter_size = filter_size
        self.no_layer = int(math.ceil(math.log2(seq_len)))
        self.output_size = input_size + filter_size * self.no_layer
        self.dilations = tuple(2 ** i for i in range(self.no_layer))

        self.params = []
        for i in range(self.no_layer):
            c_in = input_size + i * filter_size
            bound = math.sqrt(1.0 / (c_in * 2))   # PyTorch Conv1d default init
            key, k1, k2, k3, k4 = jax.random.split(key, 5)
            w1 = jax.random.uniform(k1, (filter_size, c_in, 2), jnp.float32,
                                    -bound, bound)
            b1 = jax.random.uniform(k2, (filter_size,), jnp.float32,
                                    -bound, bound)
            w2 = jax.random.uniform(k3, (filter_size, c_in, 2), jnp.float32,
                                    -bound, bound)
            b2 = jax.random.uniform(k4, (filter_size,), jnp.float32,
                                    -bound, bound)
            self.params.append((2 ** i, w1, b1, w2, b2))

        self.packed = self._pack_params()

    def _pack_params(self):
        """Fuse conv1/conv2 and ragged-pack all layers along the K (lane) axis."""
        c_in, f, n_layers = self.input_size, self.filter_size, self.no_layer
        k_sum = sum(c_in + l * f for l in range(n_layers))
        wa = np.zeros((2 * f, k_sum), np.float32)
        wb = np.zeros((2 * f, k_sum), np.float32)
        bb = np.zeros((n_layers * 2 * f, 1), np.float32)
        offsets = []
        off = 0
        for l, (_, w1, b1, w2, b2) in enumerate(self.params):
            c_l = c_in + l * f
            offsets.append(off)
            w1 = np.asarray(w1)
            w2 = np.asarray(w2)
            # Dense-concat channel order is already (input, act_0, act_1, ...),
            # so Conv1d input-channel index == slab row index: no remapping.
            wa[:f, off:off + c_l] = w1[:, :, 0]          # conv1 tap on x[t-d]
            wa[f:, off:off + c_l] = w2[:, :, 0]          # conv2 tap on x[t-d]
            wb[:f, off:off + c_l] = w1[:, :, 1]          # conv1 tap on x[t]
            wb[f:, off:off + c_l] = w2[:, :, 1]          # conv2 tap on x[t]
            bb[2 * f * l:2 * f * l + f, 0] = np.asarray(b1)
            bb[2 * f * l + f:2 * f * (l + 1), 0] = np.asarray(b2)
            off += c_l
        meta = (c_in, f, n_layers, self.dilations, tuple(offsets))
        return (jnp.asarray(wa, jnp.bfloat16), jnp.asarray(wb, jnp.bfloat16),
                jnp.asarray(bb, jnp.float32), meta)

    def __call__(self, x_nct, frame_no):
        return tc_block_forward(x_nct, frame_no, self.packed)


# --------------------------- pure-JAX reference ------------------------------


def _ref_forward(params, x_nct, frame_no, matmul_dtype=jnp.float32):
    """Reference TCBlock forward. matmul_dtype=bf16 mimics the kernel's MXU path."""
    x = jnp.transpose(x_nct, (0, 2, 1)).astype(jnp.float32)
    eid = jnp.cumsum((frame_no == 1).astype(jnp.int32))
    t_len = x.shape[1]
    for (d, w1, b1, w2, b2) in params:
        xs = jnp.concatenate(
            [jnp.zeros_like(x[:, :d, :]), x[:, :t_len - d, :]], axis=1)
        es = jnp.concatenate(
            [jnp.full((d,), -1, eid.dtype), eid[:t_len - d]])
        xs = jnp.where((eid == es)[None, :, None], xs, 0.0)
        xd = x.astype(matmul_dtype)
        xsd = xs.astype(matmul_dtype)
        w1a = w1[:, :, 0].T.astype(matmul_dtype)
        w1b = w1[:, :, 1].T.astype(matmul_dtype)
        w2a = w2[:, :, 0].T.astype(matmul_dtype)
        w2b = w2[:, :, 1].T.astype(matmul_dtype)
        xf = (jnp.einsum('ntc,cf->ntf', xsd, w1a,
                         preferred_element_type=jnp.float32)
              + jnp.einsum('ntc,cf->ntf', xd, w1b,
                           preferred_element_type=jnp.float32) + b1)
        xg = (jnp.einsum('ntc,cf->ntf', xsd, w2a,
                         preferred_element_type=jnp.float32)
              + jnp.einsum('ntc,cf->ntf', xd, w2b,
                           preferred_element_type=jnp.float32) + b2)
        x = jnp.concatenate([x, jnp.tanh(xf) * jax.nn.sigmoid(xg)], axis=-1)
    return jnp.transpose(x, (0, 2, 1))


# ----------------------------------- main ------------------------------------


if __name__ == "__main__":
    seq_len = 128        # => no_layer = 7, dilations 1..64; T = 128 (lane-dense)
    input_size = 16
    filter_size = 16
    batch = 2
    t_len = seq_len

    key = jax.random.PRNGKey(0)
    kx, kp = jax.random.split(key)
    x = jax.random.normal(kx, (batch, input_size, t_len), jnp.float32)
    # Two episodes inside the sequence (frame_no restarts at 1 at t=70).
    frame_no = jnp.concatenate([
        jnp.arange(1, 71, dtype=jnp.int32),
        jnp.arange(1, t_len - 70 + 1, dtype=jnp.int32)])

    block = TCBlockPallas(seq_len, input_size, filter_size, kp)
    out = jax.block_until_ready(block(x, frame_no))
    assert out.shape == (batch, block.output_size, t_len)

    # Tight check vs. a reference that mimics the kernel's bf16 MXU operands.
    ref_bf16 = _ref_forward(block.params, x, frame_no,
                            matmul_dtype=jnp.bfloat16)
    np.testing.assert_allclose(np.asarray(out), np.asarray(ref_bf16),
                               rtol=2e-3, atol=2e-3)
    # Loose sanity check vs. full-f32 module semantics (bf16 operand rounding).
    ref_f32 = _ref_forward(block.params, x, frame_no,
                           matmul_dtype=jnp.float32)
    np.testing.assert_allclose(np.asarray(out), np.asarray(ref_f32),
                               rtol=1e-1, atol=1e-1)
    print("KERNEL_OK")
</pallas_src>

<mosaic_0001>
module attributes {stable_mosaic.version = 11 : i64} {
  func.func @_tc_block_kernel(%arg0: i32, %arg1: memref<1x128xi32, #tpu.memory_space<vmem>>, %arg2: memref<1x16x128xf32, #tpu.memory_space<vmem>>, %arg3: memref<32x448xbf16, #tpu.memory_space<vmem>>, %arg4: memref<32x448xbf16, #tpu.memory_space<vmem>>, %arg5: memref<224x1xf32, #tpu.memory_space<vmem>>, %arg6: memref<1x128x128xf32, #tpu.memory_space<vmem>>, %arg7: memref<128x128xbf16, #tpu.memory_space<vmem>>) attributes {dimension_semantics = [#tpu.dimension_semantics<parallel>], iteration_bounds = array<i64: 2>, scalar_prefetch = 0 : i64, scratch_operands = 1 : i64, tpu.core_type = #tpu.core_type<tc>, window_params = [{pipeline_mode = #tpu.pipeline_mode<synchronous>, transform_indices = @transform_0, window_bounds = array<i64: 1, 128>}, {transform_indices = @transform_1, window_bounds = array<i64: 1, 16, 128>}, {pipeline_mode = #tpu.pipeline_mode<synchronous>, transform_indices = @transform_2, window_bounds = array<i64: 32, 448>}, {pipeline_mode = #tpu.pipeline_mode<synchronous>, transform_indices = @transform_3, window_bounds = array<i64: 32, 448>}, {pipeline_mode = #tpu.pipeline_mode<synchronous>, transform_indices = @transform_4, window_bounds = array<i64: 224, 1>}, {transform_indices = @transform_5, window_bounds = array<i64: 1, 128, 128>}]} {
    %c0 = arith.constant 0 : index
    %c0_0 = arith.constant 0 : index
    %c0_1 = arith.constant 0 : index
    %0 = vector.load %arg2[%c0, %c0_0, %c0_1] : memref<1x16x128xf32, #tpu.memory_space<vmem>>, vector<1x16x128xf32>
    %1 = vector.shape_cast %0 : vector<1x16x128xf32> to vector<16x128xf32>
    %c0_2 = arith.constant 0 : index
    %c0_3 = arith.constant 0 : index
    %c0_4 = arith.constant 0 : index
    %2 = vector.load %arg6[%c0_2, %c0_3, %c0_4] : memref<1x128x128xf32, #tpu.memory_space<vmem>>, vector<1x16x128xf32>
    %3 = vector.shape_cast %2 : vector<1x16x128xf32> to vector<16x128xf32>
    %4 = vector.shape_cast %1 : vector<16x128xf32> to vector<1x16x128xf32>
    tpu.vector_store %arg6[%c0_2, %c0_3, %c0_4], %4 {strides = array<i32>} : memref<1x128x128xf32, #tpu.memory_space<vmem>>, vector<1x16x128xf32>,
    %5 = arith.truncf %1 : vector<16x128xf32> to vector<16x128xbf16>
    %c0_5 = arith.constant 0 : index
    %c0_6 = arith.constant 0 : index
    %6 = vector.load %arg7[%c0_5, %c0_6] : memref<128x128xbf16, #tpu.memory_space<vmem>>, vector<16x128xbf16>
    tpu.vector_store %arg7[%c0_5, %c0_6], %5 {strides = array<i32>} : memref<128x128xbf16, #tpu.memory_space<vmem>>, vector<16x128xbf16>,
    %c0_7 = arith.constant 0 : index
    %c0_8 = arith.constant 0 : index
    %7 = vector.load %arg1[%c0_7, %c0_8] : memref<1x128xi32, #tpu.memory_space<vmem>>, vector<1x128xi32>
    %c0_9 = arith.constant 0 : index
    %c0_10 = arith.constant 0 : index
    %c0_11 = arith.constant 0 : index
    %8 = vector.load %arg6[%c0_9, %c0_10, %c0_11] : memref<1x128x128xf32, #tpu.memory_space<vmem>>, vector<1x16x128xf32>
    %9 = vector.shape_cast %8 : vector<1x16x128xf32> to vector<16x128xf32>
    %c1_i32 = arith.constant 1 : i32
    %10 = tpu.dynamic_rotate %9 by %c1_i32 dim 1 : vector<16x128xf32>, i32 -> vector<16x128xf32>
    %11 = arith.truncf %10 : vector<16x128xf32> to vector<16x128xbf16>
    %c0_12 = arith.constant 0 : index
    %c0_13 = arith.constant 0 : index
    %12 = vector.load %arg7[%c0_12, %c0_13] : memref<128x128xbf16, #tpu.memory_space<vmem>>, vector<16x128xbf16>
    %c0_14 = arith.constant 0 : index
    %c0_15 = arith.constant 0 : index
    %13 = vector.load %arg3[%c0_14, %c0_15] : memref<32x448xbf16, #tpu.memory_space<vmem>>, vector<32x16xbf16>
    %c0_16 = arith.constant 0 : index
    %c0_17 = arith.constant 0 : index
    %14 = vector.load %arg4[%c0_16, %c0_17] : memref<32x448xbf16, #tpu.memory_space<vmem>>, vector<32x16xbf16>
    %cst = arith.constant dense<0.000000e+00> : vector<32x128xf32>
    %15 = tpu.matmul %13, %11, %cst {dimension_numbers = #tpu.dot_dimension_numbers<[1], [0], [0], [1], [0, 0, 1, 1], [], []>} : vector<32x16xbf16>, vector<16x128xbf16>, vector<32x128xf32> -> vector<32x128xf32>
    %cst_18 = arith.constant dense<0.000000e+00> : vector<32x128xf32>
    %16 = tpu.matmul %14, %12, %cst_18 {dimension_numbers = #tpu.dot_dimension_numbers<[1], [0], [0], [1], [0, 0, 1, 1], [], []>} : vector<32x16xbf16>, vector<16x128xbf16>, vector<32x128xf32> -> vector<32x128xf32>
    %c1_i32_19 = arith.constant 1 : i32
    %17 = vector.broadcast %c1_i32_19 : i32 to vector<1x128xi32>
    %18 = arith.cmpi sge, %7, %17 : vector<1x128xi32>
    %19 = arith.extui %18 : vector<1x128xi1> to vector<1x128xi32>
    %20 = arith.sitofp %19 : vector<1x128xi32> to vector<1x128xf32>
    %21 = vector.broadcast %20 : vector<1x128xf32> to vector<32x128xf32>
    %22 = arith.mulf %15, %21 : vector<32x128xf32>
    %23 = arith.addf %22, %16 : vector<32x128xf32>
    %c0_20 = arith.constant 0 : index
    %c0_21 = arith.constant 0 : index
    %24 = vector.load %arg5[%c0_20, %c0_21] : memref<224x1xf32, #tpu.memory_space<vmem>>, vector<32x1xf32>
    %25 = vector.broadcast %24 : vector<32x1xf32> to vector<32x128xf32>
    %26 = arith.addf %23, %25 : vector<32x128xf32>
    %27 = vector.extract_strided_slice %26 {offsets = [0, 0], sizes = [16, 128], strides = [1, 1]} : vector<32x128xf32> to vector<16x128xf32>
    %28 = math.tanh %27 : vector<16x128xf32>
    %29 = vector.extract_strided_slice %26 {offsets = [16, 0], sizes = [16, 128], strides = [1, 1]} : vector<32x128xf32> to vector<16x128xf32>
    %30 = arith.negf %29 : vector<16x128xf32>
    %31 = math.exp %30 : vector<16x128xf32>
    %cst_22 = arith.constant 1.000000e+00 : f32
    %32 = vector.broadcast %cst_22 : f32 to vector<16x128xf32>
    %33 = arith.addf %32, %31 : vector<16x128xf32>
    %34 = arith.divf %32, %33 : vector<16x128xf32>
    %35 = arith.mulf %28, %34 : vector<16x128xf32>
    %c0_23 = arith.constant 0 : index
    %c16 = arith.constant 16 : index
    %c0_24 = arith.constant 0 : index
    %36 = vector.load %arg6[%c0_23, %c16, %c0_24] : memref<1x128x128xf32, #tpu.memory_space<vmem>>, vector<1x16x128xf32>
    %37 = vector.shape_cast %36 : vector<1x16x128xf32> to vector<16x128xf32>
    %38 = vector.shape_cast %35 : vector<16x128xf32> to vector<1x16x128xf32>
    tpu.vector_store %arg6[%c0_23, %c16, %c0_24], %38 {strides = array<i32>} : memref<1x128x128xf32, #tpu.memory_space<vmem>>, vector<1x16x128xf32>,
    %39 = arith.truncf %35 : vector<16x128xf32> to vector<16x128xbf16>
    %c16_25 = arith.constant 16 : index
    %c0_26 = arith.constant 0 : index
    %40 = vector.load %arg7[%c16_25, %c0_26] : memref<128x128xbf16, #tpu.memory_space<vmem>>, vector<16x128xbf16>
    tpu.vector_store %arg7[%c16_25, %c0_26], %39 {strides = array<i32>} : memref<128x128xbf16, #tpu.memory_space<vmem>>, vector<16x128xbf16>,
    %c0_27 = arith.constant 0 : index
    %c0_28 = arith.constant 0 : index
    %c0_29 = arith.constant 0 : index
    %41 = vector.load %arg6[%c0_27, %c0_28, %c0_29] : memref<1x128x128xf32, #tpu.memory_space<vmem>>, vector<1x32x128xf32>
    %42 = vector.shape_cast %41 : vector<1x32x128xf32> to vector<32x128xf32>
    %c2_i32 = arith.constant 2 : i32
    %43 = tpu.dynamic_rotate %42 by %c2_i32 dim 1 : vector<32x128xf32>, i32 -> vector<32x128xf32>
    %44 = arith.truncf %43 : vector<32x128xf32> to vector<32x128xbf16>
    %c0_30 = arith.constant 0 : index
    %c0_31 = arith.constant 0 : index
    %45 = vector.load %arg7[%c0_30, %c0_31] : memref<128x128xbf16, #tpu.memory_space<vmem>>, vector<32x128xbf16>
    %c0_32 = arith.constant 0 : index
    %c16_33 = arith.constant 16 : index
    %46 = vector.load %arg3[%c0_32, %c16_33] : memref<32x448xbf16, #tpu.memory_space<vmem>>, vector<32x32xbf16>
    %c0_34 = arith.constant 0 : index
    %c16_35 = arith.constant 16 : index
    %47 = vector.load %arg4[%c0_34, %c16_35] : memref<32x448xbf16, #tpu.memory_space<vmem>>, vector<32x32xbf16>
    %cst_36 = arith.constant dense<0.000000e+00> : vector<32x128xf32>
    %48 = tpu.matmul %46, %44, %cst_36 {dimension_numbers = #tpu.dot_dimension_numbers<[1], [0], [0], [1], [0, 0, 1, 1], [], []>} : vector<32x32xbf16>, vector<32x128xbf16>, vector<32x128xf32> -> vector<32x128xf32>
    %cst_37 = arith.constant dense<0.000000e+00> : vector<32x128xf32>
    %49 = tpu.matmul %47, %45, %cst_37 {dimension_numbers = #tpu.dot_dimension_numbers<[1], [0], [0], [1], [0, 0, 1, 1], [], []>} : vector<32x32xbf16>, vector<32x128xbf16>, vector<32x128xf32> -> vector<32x128xf32>
    %c2_i32_38 = arith.constant 2 : i32
    %50 = vector.broadcast %c2_i32_38 : i32 to vector<1x128xi32>
    %51 = arith.cmpi sge, %7, %50 : vector<1x128xi32>
    %52 = arith.extui %51 : vector<1x128xi1> to vector<1x128xi32>
    %53 = arith.sitofp %52 : vector<1x128xi32> to vector<1x128xf32>
    %54 = vector.broadcast %53 : vector<1x128xf32> to vector<32x128xf32>
    %55 = arith.mulf %48, %54 : vector<32x128xf32>
    %56 = arith.addf %55, %49 : vector<32x128xf32>
    %c32 = arith.constant 32 : index
    %c0_39 = arith.constant 0 : index
    %57 = vector.load %arg5[%c32, %c0_39] : memref<224x1xf32, #tpu.memory_space<vmem>>, vector<32x1xf32>
    %58 = vector.broadcast %57 : vector<32x1xf32> to vector<32x128xf32>
    %59 = arith.addf %56, %58 : vector<32x128xf32>
    %60 = vector.extract_strided_slice %59 {offsets = [0, 0], sizes = [16, 128], strides = [1, 1]} : vector<32x128xf32> to vector<16x128xf32>
    %61 = math.tanh %60 : vector<16x128xf32>
    %62 = vector.extract_strided_slice %59 {offsets = [16, 0], sizes = [16, 128], strides = [1, 1]} : vector<32x128xf32> to vector<16x128xf32>
    %63 = arith.negf %62 : vector<16x128xf32>
    %64 = math.exp %63 : vector<16x128xf32>
    %cst_40 = arith.constant 1.000000e+00 : f32
    %65 = vector.broadcast %cst_40 : f32 to vector<16x128xf32>
    %66 = arith.addf %65, %64 : vector<16x128xf32>
    %67 = arith.divf %65, %66 : vector<16x128xf32>
    %68 = arith.mulf %61, %67 : vector<16x128xf32>
    %c0_41 = arith.constant 0 : index
    %c32_42 = arith.constant 32 : index
    %c0_43 = arith.constant 0 : index
    %69 = vector.load %arg6[%c0_41, %c32_42, %c0_43] : memref<1x128x128xf32, #tpu.memory_space<vmem>>, vector<1x16x128xf32>
    %70 = vector.shape_cast %69 : vector<1x16x128xf32> to vector<16x128xf32>
    %71 = vector.shape_cast %68 : vector<16x128xf32> to vector<1x16x128xf32>
    tpu.vector_store %arg6[%c0_41, %c32_42, %c0_43], %71 {strides = array<i32>} : memref<1x128x128xf32, #tpu.memory_space<vmem>>, vector<1x16x128xf32>,
    %72 = arith.truncf %68 : vector<16x128xf32> to vector<16x128xbf16>
    %c32_44 = arith.constant 32 : index
    %c0_45 = arith.constant 0 : index
    %73 = vector.load %arg7[%c32_44, %c0_45] : memref<128x128xbf16, #tpu.memory_space<vmem>>, vector<16x128xbf16>
    tpu.vector_store %arg7[%c32_44, %c0_45], %72 {strides = array<i32>} : memref<128x128xbf16, #tpu.memory_space<vmem>>, vector<16x128xbf16>,
    %c0_46 = arith.constant 0 : index
    %c0_47 = arith.constant 0 : index
    %c0_48 = arith.constant 0 : index
    %74 = vector.load %arg6[%c0_46, %c0_47, %c0_48] : memref<1x128x128xf32, #tpu.memory_space<vmem>>, vector<1x48x128xf32>
    %75 = vector.shape_cast %74 : vector<1x48x128xf32> to vector<48x128xf32>
    %c4_i32 = arith.constant 4 : i32
    %76 = tpu.dynamic_rotate %75 by %c4_i32 dim 1 : vector<48x128xf32>, i32 -> vector<48x128xf32>
    %77 = arith.truncf %76 : vector<48x128xf32> to vector<48x128xbf16>
    %c0_49 = arith.constant 0 : index
    %c0_50 = arith.constant 0 : index
    %78 = vector.load %arg7[%c0_49, %c0_50] : memref<128x128xbf16, #tpu.memory_space<vmem>>, vector<48x128xbf16>
    %c0_51 = arith.constant 0 : index
    %c48 = arith.constant 48 : index
    %79 = vector.load %arg3[%c0_51, %c48] : memref<32x448xbf16, #tpu.memory_space<vmem>>, vector<32x48xbf16>
    %c0_52 = arith.constant 0 : index
    %c48_53 = arith.constant 48 : index
    %80 = vector.load %arg4[%c0_52, %c48_53] : memref<32x448xbf16, #tpu.memory_space<vmem>>, vector<32x48xbf16>
    %cst_54 = arith.constant dense<0.000000e+00> : vector<32x128xf32>
    %81 = tpu.matmul %79, %77, %cst_54 {dimension_numbers = #tpu.dot_dimension_numbers<[1], [0], [0], [1], [0, 0, 1, 1], [], []>} : vector<32x48xbf16>, vector<48x128xbf16>, vector<32x128xf32> -> vector<32x128xf32>
    %cst_55 = arith.constant dense<0.000000e+00> : vector<32x128xf32>
    %82 = tpu.matmul %80, %78, %cst_55 {dimension_numbers = #tpu.dot_dimension_numbers<[1], [0], [0], [1], [0, 0, 1, 1], [], []>} : vector<32x48xbf16>, vector<48x128xbf16>, vector<32x128xf32> -> vector<32x128xf32>
    %c4_i32_56 = arith.constant 4 : i32
    %83 = vector.broadcast %c4_i32_56 : i32 to vector<1x128xi32>
    %84 = arith.cmpi sge, %7, %83 : vector<1x128xi32>
    %85 = arith.extui %84 : vector<1x128xi1> to vector<1x128xi32>
    %86 = arith.sitofp %85 : vector<1x128xi32> to vector<1x128xf32>
    %87 = vector.broadcast %86 : vector<1x128xf32> to vector<32x128xf32>
    %88 = arith.mulf %81, %87 : vector<32x128xf32>
    %89 = arith.addf %88, %82 : vector<32x128xf32>
    %c64 = arith.constant 64 : index
    %c0_57 = arith.constant 0 : index
    %90 = vector.load %arg5[%c64, %c0_57] : memref<224x1xf32, #tpu.memory_space<vmem>>, vector<32x1xf32>
    %91 = vector.broadcast %90 : vector<32x1xf32> to vector<32x128xf32>
    %92 = arith.addf %89, %91 : vector<32x128xf32>
    %93 = vector.extract_strided_slice %92 {offsets = [0, 0], sizes = [16, 128], strides = [1, 1]} : vector<32x128xf32> to vector<16x128xf32>
    %94 = math.tanh %93 : vector<16x128xf32>
    %95 = vector.extract_strided_slice %92 {offsets = [16, 0], sizes = [16, 128], strides = [1, 1]} : vector<32x128xf32> to vector<16x128xf32>
    %96 = arith.negf %95 : vector<16x128xf32>
    %97 = math.exp %96 : vector<16x128xf32>
    %cst_58 = arith.constant 1.000000e+00 : f32
    %98 = vector.broadcast %cst_58 : f32 to vector<16x128xf32>
    %99 = arith.addf %98, %97 : vector<16x128xf32>
    %100 = arith.divf %98, %99 : vector<16x128xf32>
    %101 = arith.mulf %94, %100 : vector<16x128xf32>
    %c0_59 = arith.constant 0 : index
    %c48_60 = arith.constant 48 : index
    %c0_61 = arith.constant 0 : index
    %102 = vector.load %arg6[%c0_59, %c48_60, %c0_61] : memref<1x128x128xf32, #tpu.memory_space<vmem>>, vector<1x16x128xf32>
    %103 = vector.shape_cast %102 : vector<1x16x128xf32> to vector<16x128xf32>
    %104 = vector.shape_cast %101 : vector<16x128xf32> to vector<1x16x128xf32>
    tpu.vector_store %arg6[%c0_59, %c48_60, %c0_61], %104 {strides = array<i32>} : memref<1x128x128xf32, #tpu.memory_space<vmem>>, vector<1x16x128xf32>,
    %105 = arith.truncf %101 : vector<16x128xf32> to vector<16x128xbf16>
    %c48_62 = arith.constant 48 : index
    %c0_63 = arith.constant 0 : index
    %106 = vector.load %arg7[%c48_62, %c0_63] : memref<128x128xbf16, #tpu.memory_space<vmem>>, vector<16x128xbf16>
    tpu.vector_store %arg7[%c48_62, %c0_63], %105 {strides = array<i32>} : memref<128x128xbf16, #tpu.memory_space<vmem>>, vector<16x128xbf16>,
    %c0_64 = arith.constant 0 : index
    %c0_65 = arith.constant 0 : index
    %c0_66 = arith.constant 0 : index
    %107 = vector.load %arg6[%c0_64, %c0_65, %c0_66] : memref<1x128x128xf32, #tpu.memory_space<vmem>>, vector<1x64x128xf32>
    %108 = vector.shape_cast %107 : vector<1x64x128xf32> to vector<64x128xf32>
    %c8_i32 = arith.constant 8 : i32
    %109 = tpu.dynamic_rotate %108 by %c8_i32 dim 1 : vector<64x128xf32>, i32 -> vector<64x128xf32>
    %110 = arith.truncf %109 : vector<64x128xf32> to vector<64x128xbf16>
    %c0_67 = arith.constant 0 : index
    %c0_68 = arith.constant 0 : index
    %111 = vector.load %arg7[%c0_67, %c0_68] : memref<128x128xbf16, #tpu.memory_space<vmem>>, vector<64x128xbf16>
    %c0_69 = arith.constant 0 : index
    %c96 = arith.constant 96 : index
    %112 = vector.load %arg3[%c0_69, %c96] : memref<32x448xbf16, #tpu.memory_space<vmem>>, vector<32x64xbf16>
    %c0_70 = arith.constant 0 : index
    %c96_71 = arith.constant 96 : index
    %113 = vector.load %arg4[%c0_70, %c96_71] : memref<32x448xbf16, #tpu.memory_space<vmem>>, vector<32x64xbf16>
    %cst_72 = arith.constant dense<0.000000e+00> : vector<32x128xf32>
    %114 = tpu.matmul %112, %110, %cst_72 {dimension_numbers = #tpu.dot_dimension_numbers<[1], [0], [0], [1], [0, 0, 1, 1], [], []>} : vector<32x64xbf16>, vector<64x128xbf16>, vector<32x128xf32> -> vector<32x128xf32>
    %cst_73 = arith.constant dense<0.000000e+00> : vector<32x128xf32>
    %115 = tpu.matmul %113, %111, %cst_73 {dimension_numbers = #tpu.dot_dimension_numbers<[1], [0], [0], [1], [0, 0, 1, 1], [], []>} : vector<32x64xbf16>, vector<64x128xbf16>, vector<32x128xf32> -> vector<32x128xf32>
    %c8_i32_74 = arith.constant 8 : i32
    %116 = vector.broadcast %c8_i32_74 : i32 to vector<1x128xi32>
    %117 = arith.cmpi sge, %7, %116 : vector<1x128xi32>
    %118 = arith.extui %117 : vector<1x128xi1> to vector<1x128xi32>
    %119 = arith.sitofp %118 : vector<1x128xi32> to vector<1x128xf32>
    %120 = vector.broadcast %119 : vector<1x128xf32> to vector<32x128xf32>
    %121 = arith.mulf %114, %120 : vector<32x128xf32>
    %122 = arith.addf %121, %115 : vector<32x128xf32>
    %c96_75 = arith.constant 96 : index
    %c0_76 = arith.constant 0 : index
    %123 = vector.load %arg5[%c96_75, %c0_76] : memref<224x1xf32, #tpu.memory_space<vmem>>, vector<32x1xf32>
    %124 = vector.broadcast %123 : vector<32x1xf32> to vector<32x128xf32>
    %125 = arith.addf %122, %124 : vector<32x128xf32>
    %126 = vector.extract_strided_slice %125 {offsets = [0, 0], sizes = [16, 128], strides = [1, 1]} : vector<32x128xf32> to vector<16x128xf32>
    %127 = math.tanh %126 : vector<16x128xf32>
    %128 = vector.extract_strided_slice %125 {offsets = [16, 0], sizes = [16, 128], strides = [1, 1]} : vector<32x128xf32> to vector<16x128xf32>
    %129 = arith.negf %128 : vector<16x128xf32>
    %130 = math.exp %129 : vector<16x128xf32>
    %cst_77 = arith.constant 1.000000e+00 : f32
    %131 = vector.broadcast %cst_77 : f32 to vector<16x128xf32>
    %132 = arith.addf %131, %130 : vector<16x128xf32>
    %133 = arith.divf %131, %132 : vector<16x128xf32>
    %134 = arith.mulf %127, %133 : vector<16x128xf32>
    %c0_78 = arith.constant 0 : index
    %c64_79 = arith.constant 64 : index
    %c0_80 = arith.constant 0 : index
    %135 = vector.load %arg6[%c0_78, %c64_79, %c0_80] : memref<1x128x128xf32, #tpu.memory_space<vmem>>, vector<1x16x128xf32>
    %136 = vector.shape_cast %135 : vector<1x16x128xf32> to vector<16x128xf32>
    %137 = vector.shape_cast %134 : vector<16x128xf32> to vector<1x16x128xf32>
    tpu.vector_store %arg6[%c0_78, %c64_79, %c0_80], %137 {strides = array<i32>} : memref<1x128x128xf32, #tpu.memory_space<vmem>>, vector<1x16x128xf32>,
    %138 = arith.truncf %134 : vector<16x128xf32> to vector<16x128xbf16>
    %c64_81 = arith.constant 64 : index
    %c0_82 = arith.constant 0 : index
    %139 = vector.load %arg7[%c64_81, %c0_82] : memref<128x128xbf16, #tpu.memory_space<vmem>>, vector<16x128xbf16>
    tpu.vector_store %arg7[%c64_81, %c0_82], %138 {strides = array<i32>} : memref<128x128xbf16, #tpu.memory_space<vmem>>, vector<16x128xbf16>,
    %c0_83 = arith.constant 0 : index
    %c0_84 = arith.constant 0 : index
    %c0_85 = arith.constant 0 : index
    %140 = vector.load %arg6[%c0_83, %c0_84, %c0_85] : memref<1x128x128xf32, #tpu.memory_space<vmem>>, vector<1x80x128xf32>
    %141 = vector.shape_cast %140 : vector<1x80x128xf32> to vector<80x128xf32>
    %c16_i32 = arith.constant 16 : i32
    %142 = tpu.dynamic_rotate %141 by %c16_i32 dim 1 : vector<80x128xf32>, i32 -> vector<80x128xf32>
    %143 = arith.truncf %142 : vector<80x128xf32> to vector<80x128xbf16>
    %c0_86 = arith.constant 0 : index
    %c0_87 = arith.constant 0 : index
    %144 = vector.load %arg7[%c0_86, %c0_87] : memref<128x128xbf16, #tpu.memory_space<vmem>>, vector<80x128xbf16>
    %c0_88 = arith.constant 0 : index
    %c160 = arith.constant 160 : index
    %145 = vector.load %arg3[%c0_88, %c160] : memref<32x448xbf16, #tpu.memory_space<vmem>>, vector<32x80xbf16>
    %c0_89 = arith.constant 0 : index
    %c160_90 = arith.constant 160 : index
    %146 = vector.load %arg4[%c0_89, %c160_90] : memref<32x448xbf16, #tpu.memory_space<vmem>>, vector<32x80xbf16>
    %cst_91 = arith.constant dense<0.000000e+00> : vector<32x128xf32>
    %147 = tpu.matmul %145, %143, %cst_91 {dimension_numbers = #tpu.dot_dimension_numbers<[1], [0], [0], [1], [0, 0, 1, 1], [], []>} : vector<32x80xbf16>, vector<80x128xbf16>, vector<32x128xf32> -> vector<32x128xf32>
    %cst_92 = arith.constant dense<0.000000e+00> : vector<32x128xf32>
    %148 = tpu.matmul %146, %144, %cst_92 {dimension_numbers = #tpu.dot_dimension_numbers<[1], [0], [0], [1], [0, 0, 1, 1], [], []>} : vector<32x80xbf16>, vector<80x128xbf16>, vector<32x128xf32> -> vector<32x128xf32>
    %c16_i32_93 = arith.constant 16 : i32
    %149 = vector.broadcast %c16_i32_93 : i32 to vector<1x128xi32>
    %150 = arith.cmpi sge, %7, %149 : vector<1x128xi32>
    %151 = arith.extui %150 : vector<1x128xi1> to vector<1x128xi32>
    %152 = arith.sitofp %151 : vector<1x128xi32> to vector<1x128xf32>
    %153 = vector.broadcast %152 : vector<1x128xf32> to vector<32x128xf32>
    %154 = arith.mulf %147, %153 : vector<32x128xf32>
    %155 = arith.addf %154, %148 : vector<32x128xf32>
    %c128 = arith.constant 128 : index
    %c0_94 = arith.constant 0 : index
    %156 = vector.load %arg5[%c128, %c0_94] : memref<224x1xf32, #tpu.memory_space<vmem>>, vector<32x1xf32>
    %157 = vector.broadcast %156 : vector<32x1xf32> to vector<32x128xf32>
    %158 = arith.addf %155, %157 : vector<32x128xf32>
    %159 = vector.extract_strided_slice %158 {offsets = [0, 0], sizes = [16, 128], strides = [1, 1]} : vector<32x128xf32> to vector<16x128xf32>
    %160 = math.tanh %159 : vector<16x128xf32>
    %161 = vector.extract_strided_slice %158 {offsets = [16, 0], sizes = [16, 128], strides = [1, 1]} : vector<32x128xf32> to vector<16x128xf32>
    %162 = arith.negf %161 : vector<16x128xf32>
    %163 = math.exp %162 : vector<16x128xf32>
    %cst_95 = arith.constant 1.000000e+00 : f32
    %164 = vector.broadcast %cst_95 : f32 to vector<16x128xf32>
    %165 = arith.addf %164, %163 : vector<16x128xf32>
    %166 = arith.divf %164, %165 : vector<16x128xf32>
    %167 = arith.mulf %160, %166 : vector<16x128xf32>
    %c0_96 = arith.constant 0 : index
    %c80 = arith.constant 80 : index
    %c0_97 = arith.constant 0 : index
    %168 = vector.load %arg6[%c0_96, %c80, %c0_97] : memref<1x128x128xf32, #tpu.memory_space<vmem>>, vector<1x16x128xf32>
    %169 = vector.shape_cast %168 : vector<1x16x128xf32> to vector<16x128xf32>
    %170 = vector.shape_cast %167 : vector<16x128xf32> to vector<1x16x128xf32>
    tpu.vector_store %arg6[%c0_96, %c80, %c0_97], %170 {strides = array<i32>} : memref<1x128x128xf32, #tpu.memory_space<vmem>>, vector<1x16x128xf32>,
    %171 = arith.truncf %167 : vector<16x128xf32> to vector<16x128xbf16>
    %c80_98 = arith.constant 80 : index
    %c0_99 = arith.constant 0 : index
    %172 = vector.load %arg7[%c80_98, %c0_99] : memref<128x128xbf16, #tpu.memory_space<vmem>>, vector<16x128xbf16>
    tpu.vector_store %arg7[%c80_98, %c0_99], %171 {strides = array<i32>} : memref<128x128xbf16, #tpu.memory_space<vmem>>, vector<16x128xbf16>,
    %c0_100 = arith.constant 0 : index
    %c0_101 = arith.constant 0 : index
    %c0_102 = arith.constant 0 : index
    %173 = vector.load %arg6[%c0_100, %c0_101, %c0_102] : memref<1x128x128xf32, #tpu.memory_space<vmem>>, vector<1x96x128xf32>
    %174 = vector.shape_cast %173 : vector<1x96x128xf32> to vector<96x128xf32>
    %c32_i32 = arith.constant 32 : i32
    %175 = tpu.dynamic_rotate %174 by %c32_i32 dim 1 : vector<96x128xf32>, i32 -> vector<96x128xf32>
    %176 = arith.truncf %175 : vector<96x128xf32> to vector<96x128xbf16>
    %c0_103 = arith.constant 0 : index
    %c0_104 = arith.constant 0 : index
    %177 = vector.load %arg7[%c0_103, %c0_104] : memref<128x128xbf16, #tpu.memory_space<vmem>>, vector<96x128xbf16>
    %c0_105 = arith.constant 0 : index
    %c240 = arith.constant 240 : index
    %178 = vector.load %arg3[%c0_105, %c240] : memref<32x448xbf16, #tpu.memory_space<vmem>>, vector<32x96xbf16>
    %c0_106 = arith.constant 0 : index
    %c240_107 = arith.constant 240 : index
    %179 = vector.load %arg4[%c0_106, %c240_107] : memref<32x448xbf16, #tpu.memory_space<vmem>>, vector<32x96xbf16>
    %cst_108 = arith.constant dense<0.000000e+00> : vector<32x128xf32>
    %180 = tpu.matmul %178, %176, %cst_108 {dimension_numbers = #tpu.dot_dimension_numbers<[1], [0], [0], [1], [0, 0, 1, 1], [], []>} : vector<32x96xbf16>, vector<96x128xbf16>, vector<32x128xf32> -> vector<32x128xf32>
    %cst_109 = arith.constant dense<0.000000e+00> : vector<32x128xf32>
    %181 = tpu.matmul %179, %177, %cst_109 {dimension_numbers = #tpu.dot_dimension_numbers<[1], [0], [0], [1], [0, 0, 1, 1], [], []>} : vector<32x96xbf16>, vector<96x128xbf16>, vector<32x128xf32> -> vector<32x128xf32>
    %c32_i32_110 = arith.constant 32 : i32
    %182 = vector.broadcast %c32_i32_110 : i32 to vector<1x128xi32>
    %183 = arith.cmpi sge, %7, %182 : vector<1x128xi32>
    %184 = arith.extui %183 : vector<1x128xi1> to vector<1x128xi32>
    %185 = arith.sitofp %184 : vector<1x128xi32> to vector<1x128xf32>
    %186 = vector.broadcast %185 : vector<1x128xf32> to vector<32x128xf32>
    %187 = arith.mulf %180, %186 : vector<32x128xf32>
    %188 = arith.addf %187, %181 : vector<32x128xf32>
    %c160_111 = arith.constant 160 : index
    %c0_112 = arith.constant 0 : index
    %189 = vector.load %arg5[%c160_111, %c0_112] : memref<224x1xf32, #tpu.memory_space<vmem>>, vector<32x1xf32>
    %190 = vector.broadcast %189 : vector<32x1xf32> to vector<32x128xf32>
    %191 = arith.addf %188, %190 : vector<32x128xf32>
    %192 = vector.extract_strided_slice %191 {offsets = [0, 0], sizes = [16, 128], strides = [1, 1]} : vector<32x128xf32> to vector<16x128xf32>
    %193 = math.tanh %192 : vector<16x128xf32>
    %194 = vector.extract_strided_slice %191 {offsets = [16, 0], sizes = [16, 128], strides = [1, 1]} : vector<32x128xf32> to vector<16x128xf32>
    %195 = arith.negf %194 : vector<16x128xf32>
    %196 = math.exp %195 : vector<16x128xf32>
    %cst_113 = arith.constant 1.000000e+00 : f32
    %197 = vector.broadcast %cst_113 : f32 to vector<16x128xf32>
    %198 = arith.addf %197, %196 : vector<16x128xf32>
    %199 = arith.divf %197, %198 : vector<16x128xf32>
    %200 = arith.mulf %193, %199 : vector<16x128xf32>
    %c0_114 = arith.constant 0 : index
    %c96_115 = arith.constant 96 : index
    %c0_116 = arith.constant 0 : index
    %201 = vector.load %arg6[%c0_114, %c96_115, %c0_116] : memref<1x128x128xf32, #tpu.memory_space<vmem>>, vector<1x16x128xf32>
    %202 = vector.shape_cast %201 : vector<1x16x128xf32> to vector<16x128xf32>
    %203 = vector.shape_cast %200 : vector<16x128xf32> to vector<1x16x128xf32>
    tpu.vector_store %arg6[%c0_114, %c96_115, %c0_116], %203 {strides = array<i32>} : memref<1x128x128xf32, #tpu.memory_space<vmem>>, vector<1x16x128xf32>,
    %204 = arith.truncf %200 : vector<16x128xf32> to vector<16x128xbf16>
    %c96_117 = arith.constant 96 : index
    %c0_118 = arith.constant 0 : index
    %205 = vector.load %arg7[%c96_117, %c0_118] : memref<128x128xbf16, #tpu.memory_space<vmem>>, vector<16x128xbf16>
    tpu.vector_store %arg7[%c96_117, %c0_118], %204 {strides = array<i32>} : memref<128x128xbf16, #tpu.memory_space<vmem>>, vector<16x128xbf16>,
    %c0_119 = arith.constant 0 : index
    %c0_120 = arith.constant 0 : index
    %c0_121 = arith.constant 0 : index
    %206 = vector.load %arg6[%c0_119, %c0_120, %c0_121] : memref<1x128x128xf32, #tpu.memory_space<vmem>>, vector<1x112x128xf32>
    %207 = vector.shape_cast %206 : vector<1x112x128xf32> to vector<112x128xf32>
    %c64_i32 = arith.constant 64 : i32
    %208 = tpu.dynamic_rotate %207 by %c64_i32 dim 1 : vector<112x128xf32>, i32 -> vector<112x128xf32>
    %209 = arith.truncf %208 : vector<112x128xf32> to vector<112x128xbf16>
    %c0_122 = arith.constant 0 : index
    %c0_123 = arith.constant 0 : index
    %210 = vector.load %arg7[%c0_122, %c0_123] : memref<128x128xbf16, #tpu.memory_space<vmem>>, vector<112x128xbf16>
    %c0_124 = arith.constant 0 : index
    %c336 = arith.constant 336 : index
    %211 = vector.load %arg3[%c0_124, %c336] : memref<32x448xbf16, #tpu.memory_space<vmem>>, vector<32x112xbf16>
    %c0_125 = arith.constant 0 : index
    %c336_126 = arith.constant 336 : index
    %212 = vector.load %arg4[%c0_125, %c336_126] : memref<32x448xbf16, #tpu.memory_space<vmem>>, vector<32x112xbf16>
    %cst_127 = arith.constant dense<0.000000e+00> : vector<32x128xf32>
    %213 = tpu.matmul %211, %209, %cst_127 {dimension_numbers = #tpu.dot_dimension_numbers<[1], [0], [0], [1], [0, 0, 1, 1], [], []>} : vector<32x112xbf16>, vector<112x128xbf16>, vector<32x128xf32> -> vector<32x128xf32>
    %cst_128 = arith.constant dense<0.000000e+00> : vector<32x128xf32>
    %214 = tpu.matmul %212, %210, %cst_128 {dimension_numbers = #tpu.dot_dimension_numbers<[1], [0], [0], [1], [0, 0, 1, 1], [], []>} : vector<32x112xbf16>, vector<112x128xbf16>, vector<32x128xf32> -> vector<32x128xf32>
    %c64_i32_129 = arith.constant 64 : i32
    %215 = vector.broadcast %c64_i32_129 : i32 to vector<1x128xi32>
    %216 = arith.cmpi sge, %7, %215 : vector<1x128xi32>
    %217 = arith.extui %216 : vector<1x128xi1> to vector<1x128xi32>
    %218 = arith.sitofp %217 : vector<1x128xi32> to vector<1x128xf32>
    %219 = vector.broadcast %218 : vector<1x128xf32> to vector<32x128xf32>
    %220 = arith.mulf %213, %219 : vector<32x128xf32>
    %221 = arith.addf %220, %214 : vector<32x128xf32>
    %c192 = arith.constant 192 : index
    %c0_130 = arith.constant 0 : index
    %222 = vector.load %arg5[%c192, %c0_130] : memref<224x1xf32, #tpu.memory_space<vmem>>, vector<32x1xf32>
    %223 = vector.broadcast %222 : vector<32x1xf32> to vector<32x128xf32>
    %224 = arith.addf %221, %223 : vector<32x128xf32>
    %225 = vector.extract_strided_slice %224 {offsets = [0, 0], sizes = [16, 128], strides = [1, 1]} : vector<32x128xf32> to vector<16x128xf32>
    %226 = math.tanh %225 : vector<16x128xf32>
    %227 = vector.extract_strided_slice %224 {offsets = [16, 0], sizes = [16, 128], strides = [1, 1]} : vector<32x128xf32> to vector<16x128xf32>
    %228 = arith.negf %227 : vector<16x128xf32>
    %229 = math.exp %228 : vector<16x128xf32>
    %cst_131 = arith.constant 1.000000e+00 : f32
    %230 = vector.broadcast %cst_131 : f32 to vector<16x128xf32>
    %231 = arith.addf %230, %229 : vector<16x128xf32>
    %232 = arith.divf %230, %231 : vector<16x128xf32>
    %233 = arith.mulf %226, %232 : vector<16x128xf32>
    %c0_132 = arith.constant 0 : index
    %c112 = arith.constant 112 : index
    %c0_133 = arith.constant 0 : index
    %234 = vector.load %arg6[%c0_132, %c112, %c0_133] : memref<1x128x128xf32, #tpu.memory_space<vmem>>, vector<1x16x128xf32>
    %235 = vector.shape_cast %234 : vector<1x16x128xf32> to vector<16x128xf32>
    %236 = vector.shape_cast %233 : vector<16x128xf32> to vector<1x16x128xf32>
    tpu.vector_store %arg6[%c0_132, %c112, %c0_133], %236 {strides = array<i32>} : memref<1x128x128xf32, #tpu.memory_space<vmem>>, vector<1x16x128xf32>,
    %237 = arith.truncf %233 : vector<16x128xf32> to vector<16x128xbf16>
    %c112_134 = arith.constant 112 : index
    %c0_135 = arith.constant 0 : index
    %238 = vector.load %arg7[%c112_134, %c0_135] : memref<128x128xbf16, #tpu.memory_space<vmem>>, vector<16x128xbf16>
    tpu.vector_store %arg7[%c112_134, %c0_135], %237 {strides = array<i32>} : memref<128x128xbf16, #tpu.memory_space<vmem>>, vector<16x128xbf16>,
    return
  }
  func.func @transform_0(%arg0: i32) -> (i32, i32) {
    %c0_i32 = arith.constant 0 : i32
    %c0_i32_0 = arith.constant 0 : i32
    %c0_i32_1 = arith.constant 0 : i32
    return %c0_i32, %c0_i32_0 : i32, i32
  }
  func.func @transform_1(%arg0: i32) -> (i32, i32, i32) {
    %c0_i32 = arith.constant 0 : i32
    %c0_i32_0 = arith.constant 0 : i32
    %c0_i32_1 = arith.constant 0 : i32
    return %arg0, %c0_i32, %c0_i32_0 : i32, i32, i32
  }
  func.func @transform_2(%arg0: i32) -> (i32, i32) {
    %c0_i32 = arith.constant 0 : i32
    %c0_i32_0 = arith.constant 0 : i32
    %c0_i32_1 = arith.constant 0 : i32
    return %c0_i32, %c0_i32_0 : i32, i32
  }
  func.func @transform_3(%arg0: i32) -> (i32, i32) {
    %c0_i32 = arith.constant 0 : i32
    %c0_i32_0 = arith.constant 0 : i32
    %c0_i32_1 = arith.constant 0 : i32
    return %c0_i32, %c0_i32_0 : i32, i32
  }
  func.func @transform_4(%arg0: i32) -> (i32, i32) {
    %c0_i32 = arith.constant 0 : i32
    %c0_i32_0 = arith.constant 0 : i32
    %c0_i32_1 = arith.constant 0 : i32
    return %c0_i32, %c0_i32_0 : i32, i32
  }
  func.func @transform_5(%arg0: i32) -> (i32, i32, i32) {
    %c0_i32 = arith.constant 0 : i32
    %c0_i32_0 = arith.constant 0 : i32
    %c0_i32_1 = arith.constant 0 : i32
    return %arg0, %c0_i32, %c0_i32_0 : i32, i32, i32
  }
}

</mosaic_0001>

<llo_original>
// kernel: tpu_custom_call.1
$region0: #{tpu_custom_call.1}
  #allocation0 [shape = 'u32[]', space=smem, size = 0x4, offset = 0x4, fixed_abs, tag = 'smem constant byte address 0x4 - core index']
  #allocation1 [shape = 'u32[144,128]{1,0:T(1,128)}', space=vmem, size = 0x12000, scoped, tag = 'internal scratch']
  #allocation2 [shape = 'bf16[128,128]{1,0:T(8,128)(2,1)}', space=vmem, size = 0x8000, scoped, tag = 'scratch operand']
  %s0 = inlined_call_operand.vmem [shape: s32[1,128], index: 0, kind: input, shape index: {}]
  %s1 = inlined_call_operand.vmem [shape: f32[2,16,128], index: 1, kind: input, shape index: {}]
  %s2 = inlined_call_operand.vmem [shape: bf16[32,448], index: 2, kind: input, shape index: {}]
  %s3 = inlined_call_operand.vmem [shape: bf16[32,448], index: 3, kind: input, shape index: {}]
  %s4 = inlined_call_operand.vmem [shape: f32[224,1], index: 4, kind: input, shape index: {}]
  %s5 = inlined_call_operand.hbm [shape: f32[2,128,128], index: 5, kind: output, shape index: {}]
  %s6 = sld [smem:[#allocation0]]
  $region53: #{tpu_custom_call.1} parent=0
    _
  %s8 = ssub.s32 1, %s6
  %s9 = scalar_select 0, %s8, %s6
  $region1: #{tpu_custom_call.1} parent=0
    #allocation3 [shape = 'u8[131072]{0}', space=vmem, size = 0x20000, scoped, tag = 'output window, operand 0']
    #allocation4 [shape = 's32[2]{0}', space=sflag, size = 0x8, scoped, tag = 'scoped memory for tpu_custom_call.1']
    %10 = vsyncpa [#allocation4], 0
    %s11 = scalar_lea.sflag [#allocation4], 1
    %12 = vsyncpa %s11, 0
    loop: start=0, step=1, limit=4
    $region2: #{tpu_custom_call.1} parent=1 // loop_pre_header
      _
    $region3: #{tpu_custom_call.1} parent=1 // loop_header
      %s14 = sphi 0, %s18
      %p15 = scmp.ge.s32.totalorder %s14, 4
      %s22 = sphi 0, %s22
      %s24 = sphi 0, %s22
      %s25 = sphi 0, %s24
      %s39 = sphi 0, %s25
      %s45 = sphi 0, %s47
      %s48 = sphi 0, %s45
      %s49 = sphi 0, %s48
      %s65 = sphi 0, %s49
      %s69 = sphi 0, %s69
      %s71 = sphi 0, %s69
      %s72 = sphi 0, %s71
      %s86 = sphi 0, %s72
      %s90 = sphi 0, %s90
      %s92 = sphi 0, %s90
      %s93 = sphi 0, %s92
      %s107 = sphi 0, %s93
      %s111 = sphi 0, %s111
      %s113 = sphi 0, %s111
      %s114 = sphi 0, %s113
      %s128 = sphi 0, %s114
      %s134 = sphi 0, %s136
      %s137 = sphi 0, %s134
      %s138 = sphi 0, %s137
      %s154 = sphi 0, %s138
    $region4: #{tpu_custom_call.1} parent=1 // loop_header_branch
      %17 = sbr.rel (%p15) target = $region8
    $region5: #{tpu_custom_call.1} parent=1 // loop_body
      %s19 = ssub.s32 %s14, 1
      %s20 = ssub.s32 %s14, 2
      %s21 = sadd.s32 %s14, 1
      %s23 = sadd.s32 %s22, 1
      %p26 = scmp.eq.s32.totalorder %s14, 1
      %p27 = scmp.ne.s32.totalorder %s22, %s24
      %p28 = scmp.eq.s32.totalorder %s14, 0
      %p29 = por %p27, %p28
      %p30 = scmp.ne.s32.totalorder %s22, %s24
      %p31 = scmp.eq.s32.totalorder %s19, 1
      %p32 = por %p30, %p31
      %p33 = scmp.ne.s32.totalorder %s24, %s25
      %p34 = scmp.eq.s32.totalorder %s19, 0
      %p35 = por %p33, %p34
      %p36 = scmp.ne.s32.totalorder %s24, %s25
      %p37 = scmp.eq.s32.totalorder %s20, 1
      %p38 = por %p36, %p37
      %p40 = scmp.ne.s32.totalorder %s25, %s39
      %p41 = scmp.eq.s32.totalorder %s20, 0
      %p42 = por %p40, %p41
      %s43 = ssub.s32 %s14, %s21
      %p44 = scmp.eq.s32.totalorder %s43, 0
      %s46 = sadd.s32 %s45, 1
      %s47 = scalar_select %p44, %s45, %s46
      %p50 = pneg %p44
      %p51 = scmp.eq.s32.totalorder %s14, 1
      %p52 = por %p50, %p51
      %p53 = scmp.ne.s32.totalorder %s45, %s48
      %p54 = scmp.eq.s32.totalorder %s14, 0
      %p55 = por %p53, %p54
      %p56 = scmp.ne.s32.totalorder %s45, %s48
      %p57 = scmp.eq.s32.totalorder %s19, 1
      %p58 = por %p56, %p57
      %p59 = scmp.ne.s32.totalorder %s48, %s49
      %p60 = scmp.eq.s32.totalorder %s19, 0
      %p61 = por %p59, %p60
      %p62 = scmp.ne.s32.totalorder %s48, %s49
      %p63 = scmp.eq.s32.totalorder %s20, 1
      %p64 = por %p62, %p63
      %p66 = scmp.ne.s32.totalorder %s49, %s65
      %p67 = scmp.eq.s32.totalorder %s20, 0
      %p68 = por %p66, %p67
      %s70 = sadd.s32 %s69, 1
      %p73 = scmp.eq.s32.totalorder %s14, 1
      %p74 = scmp.ne.s32.totalorder %s69, %s71
      %p75 = scmp.eq.s32.totalorder %s14, 0
      %p76 = por %p74, %p75
      %p77 = scmp.ne.s32.totalorder %s69, %s71
      %p78 = scmp.eq.s32.totalorder %s19, 1
      %p79 = por %p77, %p78
      %p80 = scmp.ne.s32.totalorder %s71, %s72
      %p81 = scmp.eq.s32.totalorder %s19, 0
      %p82 = por %p80, %p81
      %p83 = scmp.ne.s32.totalorder %s71, %s72
      %p84 = scmp.eq.s32.totalorder %s20, 1
      %p85 = por %p83, %p84
      %p87 = scmp.ne.s32.totalorder %s72, %s86
      %p88 = scmp.eq.s32.totalorder %s20, 0
      %p89 = por %p87, %p88
      %s91 = sadd.s32 %s90, 1
      %p94 = scmp.eq.s32.totalorder %s14, 1
      %p95 = scmp.ne.s32.totalorder %s90, %s92
      %p96 = scmp.eq.s32.totalorder %s14, 0
      %p97 = por %p95, %p96
      %p98 = scmp.ne.s32.totalorder %s90, %s92
      %p99 = scmp.eq.s32.totalorder %s19, 1
      %p100 = por %p98, %p99
      %p101 = scmp.ne.s32.totalorder %s92, %s93
      %p102 = scmp.eq.s32.totalorder %s19, 0
      %p103 = por %p101, %p102
      %p104 = scmp.ne.s32.totalorder %s92, %s93
      %p105 = scmp.eq.s32.totalorder %s20, 1
      %p106 = por %p104, %p105
      %p108 = scmp.ne.s32.totalorder %s93, %s107
      %p109 = scmp.eq.s32.totalorder %s20, 0
      %p110 = por %p108, %p109
      %s112 = sadd.s32 %s111, 1
      %p115 = scmp.eq.s32.totalorder %s14, 1
      %p116 = scmp.ne.s32.totalorder %s111, %s113
      %p117 = scmp.eq.s32.totalorder %s14, 0
      %p118 = por %p116, %p117
      %p119 = scmp.ne.s32.totalorder %s111, %s113
      %p120 = scmp.eq.s32.totalorder %s19, 1
      %p121 = por %p119, %p120
      %p122 = scmp.ne.s32.totalorder %s113, %s114
      %p123 = scmp.eq.s32.totalorder %s19, 0
      %p124 = por %p122, %p123
      %p125 = scmp.ne.s32.totalorder %s113, %s114
      %p126 = scmp.eq.s32.totalorder %s20, 1
      %p127 = por %p125, %p126
      %p129 = scmp.ne.s32.totalorder %s114, %s128
      %p130 = scmp.eq.s32.totalorder %s20, 0
      %p131 = por %p129, %p130
      %s132 = ssub.s32 %s14, %s21
      %p133 = scmp.eq.s32.totalorder %s132, 0
      %s135 = sadd.s32 %s134, 1
      %s136 = scalar_select %p133, %s134, %s135
      %p139 = pneg %p133
      %p140 = scmp.eq.s32.totalorder %s14, 1
      %p141 = por %p139, %p140
      %p142 = scmp.ne.s32.totalorder %s134, %s137
      %p143 = scmp.eq.s32.totalorder %s14, 0
      %p144 = por %p142, %p143
      %p145 = scmp.ne.s32.totalorder %s134, %s137
      %p146 = scmp.eq.s32.totalorder %s19, 1
      %p147 = por %p145, %p146
      %p148 = scmp.ne.s32.totalorder %s137, %s138
      %p149 = scmp.eq.s32.totalorder %s19, 0
      %p150 = por %p148, %p149
      %p151 = scmp.ne.s32.totalorder %s137, %s138
      %p152 = scmp.eq.s32.totalorder %s20, 1
      %p153 = por %p151, %p152
      %p155 = scmp.ne.s32.totalorder %s138, %s154
      %p156 = scmp.eq.s32.totalorder %s20, 0
      %p157 = por %p155, %p156
      %p158 = scmp.le.s32.totalorder 1, %s14
      %p159 = scmp.lt.s32.totalorder %s14, 3
      %p160 = pnand %p158, %p159
      %p161 = pneg %p160
      // Predicated region
      $region9: #{tpu_custom_call.1} parent=5 // pred_check
        _
      $region10: #{tpu_custom_call.1} parent=5 // pred_check_branch
        %163 = sbr.rel (%p160) target = $region12
      $region11: #{tpu_custom_call.1} parent=5 // pred_region
        %s164 = ssub.s32 %s14, 1
        // Predicated region
        $region13: #{tpu_custom_call.1} parent=11 // pred_check
          %p165 = pneg %p35
        $region14: #{tpu_custom_call.1} parent=11 // pred_check_branch
          %167 = sbr.rel (%p165) target = $region16
        $region15: #{tpu_custom_call.1} parent=11 // pred_region
          _
        $region16: #{tpu_custom_call.1} parent=11 // pred_fallthru
          _
        // Predicated region
        $region17: #{tpu_custom_call.1} parent=11 // pred_check
          %p168 = pneg %p82
        $region18: #{tpu_custom_call.1} parent=11 // pred_check_branch
          %170 = sbr.rel (%p168) target = $region20
        $region19: #{tpu_custom_call.1} parent=11 // pred_region
          _
        $region20: #{tpu_custom_call.1} parent=11 // pred_fallthru
          _
        // Predicated region
        $region21: #{tpu_custom_call.1} parent=11 // pred_check
          %p171 = pneg %p103
        $region22: #{tpu_custom_call.1} parent=11 // pred_check_branch
          %173 = sbr.rel (%p171) target = $region24
        $region23: #{tpu_custom_call.1} parent=11 // pred_region
          _
        $region24: #{tpu_custom_call.1} parent=11 // pred_fallthru
          _
        // Predicated region
        $region25: #{tpu_custom_call.1} parent=11 // pred_check
          %p174 = pneg %p124
        $region26: #{tpu_custom_call.1} parent=11 // pred_check_branch
          %176 = sbr.rel (%p174) target = $region28
        $region27: #{tpu_custom_call.1} parent=11 // pred_region
          _
        $region28: #{tpu_custom_call.1} parent=11 // pred_fallthru
          _
      $region12: #{tpu_custom_call.1} parent=5 // pred_fallthru
        _
      %p177 = scmp.lt.s32.totalorder %s14, 2
      // Predicated region
      $region29: #{tpu_custom_call.1} parent=5 // pred_check
        %p178 = pneg %p177
      $region30: #{tpu_custom_call.1} parent=5 // pred_check_branch
        %180 = sbr.rel (%p178) target = $region32
      $region31: #{tpu_custom_call.1} parent=5 // pred_region
        // Predicated region
        $region33: #{tpu_custom_call.1} parent=31 // pred_check
          %p181 = pneg %p55
        $region34: #{tpu_custom_call.1} parent=31 // pred_check_branch
          %183 = sbr.rel (%p181) target = $region36
        $region35: #{tpu_custom_call.1} parent=31 // pred_region
          %p184 = scmp.lt.s32.totalorder %s14, 1
          %s185 = scalar_select %p184, %s14, 1
          %s186 = smul.addr %s185, 2
          %s187 = smul.addr %s186, 8
          %s188 = scalar_lea.vmem %s1, %s187
        $region36: #{tpu_custom_call.1} parent=31 // pred_fallthru
          _
      $region32: #{tpu_custom_call.1} parent=5 // pred_fallthru
        _
      %p189 = scmp.le.s32.totalorder 1, %s14
      %p190 = scmp.lt.s32.totalorder %s14, 3
      %p191 = pnand %p189, %p190
      %p192 = pneg %p191
      // Predicated region
      $region37: #{tpu_custom_call.1} parent=5 // pred_check
        _
      $region38: #{tpu_custom_call.1} parent=5 // pred_check_branch
        %194 = sbr.rel (%p191) target = $region40
      $region39: #{tpu_custom_call.1} parent=5 // pred_region
        %s195 = ssub.s32 %s14, 1
        %p196 = pneg %p35
        %p197 = pneg %p32
        %p198 = scmp.lt.s32.totalorder %s19, 1
        %s199 = scalar_select %p198, %s19, 1
        %s200 = smul.addr %s199, 2
        %s201 = smul.addr %s200, 8
        %s202 = scalar_lea.vmem %s1, %s201
        %p203 = pneg %p61
        %p204 = pneg %p58
        %p205 = pneg %p82
        %p206 = pneg %p79
        %p207 = pneg %p103
        %p208 = pneg %p100
        %p209 = pneg %p124
        %p210 = pneg %p121
        %p211 = pneg %p150
        %p212 = pneg %p147
        %s213 = sand.u32 %s137, 1
        %s214 = scalar_lea.sflag [#allocation4], %s213
        %s215 = sand.u32 %s137, 1
        %s216 = smul.addr %s215, 128
        %s217 = scalar_lea.vmem [#allocation3], %s216
        %p218 = scmp.lt.s32.totalorder %s19, 1
        %s219 = scalar_select %p218, %s19, 1
        %s220 = smul.addr %s219, 2
        %s221 = smul.addr %s220, 8
        %s222 = scalar_lea.vmem %s1, %s221
        %v224 = vld [vmem:[%s222] sm:$0xff]
        %v225 = vld [vmem:[%s222 + $0x8] sm:$0xff]
        %226 = vst [vmem:[%s217] sm:$0xff] %v224
        %227 = vst [vmem:[%s217 + $0x8] sm:$0xff] %v225
        %v228 = vpack.c.bf16 %v225, %v224
        %v230 = vunpack.c.l.b16 %v228
        %v231 = vunpack.c.h.b16 %v228
        %v232 = vpack.c.b16 %v230, %v230
        %v233 = vpack.c.b16 %v231, %v231
        %236 = vst [vmem:[#allocation2] sm:$0xf] %v232
        %237 = vst [vmem:[#allocation2 + $0x4] sm:$0xf] %v233
        %v238 = vld [vmem:[%s0] sm:$0x1]
        %v239 = vld [vmem:[%s217] sm:$0xff]
        %v240 = vld [vmem:[%s217 + $0x8] sm:$0xff]
        %241 = vrot.lane.b32.xlu0 %v239, 1
        %v242 = vpop.permute.xlu0 %241
        %243 = vrot.lane.b32.xlu0 %v240, 1
        %v244 = vpop.permute.xlu0 %243
        %v245 = vpack.c.bf16 %v244, %v242
        %v246 = vld [vmem:[#allocation2] sm:$0xf]
        %v247 = vld [vmem:[#allocation2 + $0x4] sm:$0xf]
        %v248 = vld [vmem:[%s2] sm:$0xf]
        %v249 = vld [vmem:[%s2 + $0x10] sm:$0xf]
        %v250 = vld [vmem:[%s2 + $0x20] sm:$0xf]
        %v251 = vld [vmem:[%s2 + $0x30] sm:$0xf]
        %v252 = vld [vmem:[%s3] sm:$0xf]
        %v253 = vld [vmem:[%s3 + $0x10] sm:$0xf]
        %v254 = vld [vmem:[%s3 + $0x20] sm:$0xf]
        %v255 = vld [vmem:[%s3 + $0x30] sm:$0xf]
        %v260 = vunpack.c.l.b16 %v248
        %v261 = vunpack.c.l.b16 %v249
        %v262 = vunpack.c.l.b16 %v250
        %v263 = vunpack.c.l.b16 %v251
        %v264 = vpack.c.b16 %v261, %v260
        %v265 = vpack.c.b16 %v263, %v262
        %vm266 = vcmask 130048
        %v268 = vsel %vm266, %v264, 0
        %v271 = vsel %vm266, %v265, 0
        %273 = vmatprep.subr.bf16.mxu0 0
        %274 = vmatpush1.bf16.msra.mxu0 0
        %275 = vmatprep.subr.bf16.mxu0 0
        %276 = vmatpush1.bf16.msra.mxu0 0
        %277 = vmatprep.subr.bf16.mxu0 0
        %278 = vmatpush1.bf16.msra.mxu0 0
        %279 = vmatprep.subr.bf16.mxu0 0
        %280 = vmatpush1.bf16.msra.mxu0 0
        %281 = vmatprep.subr.bf16.mxu0 0
        %282 = vmatpush1.bf16.msra.mxu0 0
        %283 = vmatprep.subr.bf16.mxu0 0
        %284 = vmatpush1.bf16.msra.mxu0 0
        %285 = vmatprep.subr.bf16.mxu0 0
        %286 = vmatpush1.bf16.msra.mxu0 0
        %287 = vmatprep.subr.bf16.mxu0 0
        %288 = vmatpush1.bf16.msra.mxu0 %v245
        %289 = vmatprep.subr.bf16.mxu0 0
        %290 = vmatpush2.bf16.msra.mxu0 0
        %291 = vmatprep.subr.bf16.mxu0 0
        %292 = vmatpush2.bf16.msra.mxu0 0
        %293 = vmatprep.subr.bf16.mxu0 0
        %294 = vmatpush2.bf16.msra.mxu0 0
        %295 = vmatprep.subr.bf16.mxu0 0
        %296 = vmatpush2.bf16.msra.mxu0 0
        %297 = vmatprep.subr.bf16.mxu0 0
        %298 = vmatpush2.bf16.msra.mxu0 0
        %299 = vmatprep.subr.bf16.mxu0 0
        %300 = vmatpush2.bf16.msra.mxu0 0
        %301 = vmatprep.subr.bf16.mxu0 0
        %302 = vmatpush2.bf16.msra.mxu0 0
        %303 = vmatprep.subr.bf16.mxu0 0
        %304 = vmatpush2.bf16.msra.mxu0 0
        %305 = vmatprep.mubr.bf16.mxu0 0
        %306 = vmatmul.mubr.bf16.gmra.mxu0 %v268
        %v307 = vpop.f32.mrf.mxu0
        %v308 = vadd.f32 0.0, %v307
        %v309 = vpop.f32.mrf.mxu0
        %v310 = vpop.f32.mrf.mxu0
        %v311 = vadd.f32 0.0, %v310
        %v312 = vpop.f32.mrf.mxu0
        %313 = vmatprep.mubr.bf16.mxu0 0
        %314 = vmatmul.mubr.bf16.gmra.mxu0 %v271
        %v315 = vpop.f32.mrf.mxu0
        %v316 = vadd.f32 0.0, %v315
        %v317 = vpop.f32.mrf.mxu0
        %v318 = vpop.f32.mrf.mxu0
        %v319 = vadd.f32 0.0, %v318
        %v320 = vpop.f32.mrf.mxu0
        %321 = vdwg.mxu0
        %v326 = vunpack.c.l.b16 %v252
        %v327 = vunpack.c.l.b16 %v253
        %v328 = vunpack.c.l.b16 %v254
        %v329 = vunpack.c.l.b16 %v255
        %v330 = vpack.c.b16 %v327, %v326
        %v331 = vpack.c.b16 %v329, %v328
        %v334 = vunpack.c.l.b16 %v246
        %v335 = vunpack.c.l.b16 %v247
        %v336 = vpack.c.b16 %v335, %v334
        %v339 = vsel %vm266, %v330, 0
        %v342 = vsel %vm266, %v331, 0
        %344 = vmatprep.subr.bf16.mxu0 0
        %345 = vmatpush1.bf16.msra.mxu0 0
        %346 = vmatprep.subr.bf16.mxu0 0
        %347 = vmatpush1.bf16.msra.mxu0 0
        %348 = vmatprep.subr.bf16.mxu0 0
        %349 = vmatpush1.bf16.msra.mxu0 0
        %350 = vmatprep.subr.bf16.mxu0 0
        %351 = vmatpush1.bf16.msra.mxu0 0
        %352 = vmatprep.subr.bf16.mxu0 0
        %353 = vmatpush1.bf16.msra.mxu0 0
        %354 = vmatprep.subr.bf16.mxu0 0
        %355 = vmatpush1.bf16.msra.mxu0 0
        %356 = vmatprep.subr.bf16.mxu0 0
        %357 = vmatpush1.bf16.msra.mxu0 0
        %358 = vmatprep.subr.bf16.mxu0 0
        %359 = vmatpush1.bf16.msra.mxu0 %v336
        %360 = vmatprep.subr.bf16.mxu0 0
        %361 = vmatpush2.bf16.msra.mxu0 0
        %362 = vmatprep.subr.bf16.mxu0 0
        %363 = vmatpush2.bf16.msra.mxu0 0
        %364 = vmatprep.subr.bf16.mxu0 0
        %365 = vmatpush2.bf16.msra.mxu0 0
        %366 = vmatprep.subr.bf16.mxu0 0
        %367 = vmatpush2.bf16.msra.mxu0 0
        %368 = vmatprep.subr.bf16.mxu0 0
        %369 = vmatpush2.bf16.msra.mxu0 0
        %370 = vmatprep.subr.bf16.mxu0 0
        %371 = vmatpush2.bf16.msra.mxu0 0
        %372 = vmatprep.subr.bf16.mxu0 0
        %373 = vmatpush2.bf16.msra.mxu0 0
        %374 = vmatprep.subr.bf16.mxu0 0
        %375 = vmatpush2.bf16.msra.mxu0 0
        %376 = vmatprep.mubr.bf16.mxu0 0
        %377 = vmatmul.mubr.bf16.gmra.mxu0 %v339
        %v378 = vpop.f32.mrf.mxu0
        %v379 = vadd.f32 0.0, %v378
        %v380 = vpop.f32.mrf.mxu0
        %v381 = vpop.f32.mrf.mxu0
        %v382 = vadd.f32 0.0, %v381
        %v383 = vpop.f32.mrf.mxu0
        %384 = vmatprep.mubr.bf16.mxu0 0
        %385 = vmatmul.mubr.bf16.gmra.mxu0 %v342
        %v386 = vpop.f32.mrf.mxu0
        %v387 = vadd.f32 0.0, %v386
        %v388 = vpop.f32.mrf.mxu0
        %v389 = vpop.f32.mrf.mxu0
        %v390 = vadd.f32 0.0, %v389
        %v391 = vpop.f32.mrf.mxu0
        %392 = vdwg.mxu0
        %vm393 = vcmp.ge.s32.totalorder %v238, 1
        %v394 = vsel %vm393, 1, 0
        %v395 = vcvt.s32.f32 %v394
        %v397 = vlaneseq
        %v398 = vshrl.u32 %v397, 7
        %v399 = vsub.s32 0, %v398
        %v400 = vrot.slane %v395, %v399
        %v402 = vmul.f32 %v308, %v400
        %v403 = vmul.f32 %v311, %v400
        %v404 = vmul.f32 %v316, %v400
        %v405 = vmul.f32 %v319, %v400
        %v406 = vadd.f32 %v402, %v379
        %v407 = vadd.f32 %v403, %v382
        %v408 = vadd.f32 %v404, %v387
        %v409 = vadd.f32 %v405, %v390
        %v410 = vld [vmem:[%s4] sm:$0xff]
        %v411 = vld [vmem:[%s4 + $0x8] sm:$0xff]
        %v412 = vld [vmem:[%s4 + $0x10] sm:$0xff]
        %v413 = vld [vmem:[%s4 + $0x18] sm:$0xff]
        %415 = vset.pattern.permute.xlu0 0
        %416 = vperm.xlu0 %415, %v410
        %v417 = vpop.permute.xlu0 %416
        %420 = vset.pattern.permute.xlu0 0
        %421 = vperm.xlu0 %420, %v411
        %v422 = vpop.permute.xlu0 %421
        %425 = vset.pattern.permute.xlu0 0
        %426 = vperm.xlu0 %425, %v412
        %v427 = vpop.permute.xlu0 %426
        %430 = vset.pattern.permute.xlu0 0
        %431 = vperm.xlu0 %430, %v413
        %v432 = vpop.permute.xlu0 %431
        %v434 = vadd.f32 %v406, %v417
        %v435 = vadd.f32 %v407, %v422
        %v436 = vadd.f32 %v408, %v427
        %v437 = vadd.f32 %v409, %v432
        %v438 = vtanh.pop %v434
        %v439 = vtanh.pop %v435
        %v440 = vxor.u32 %v436, 2147483648
        %v441 = vxor.u32 %v437, 2147483648
        %v442 = vmul.f32 %v440, 1.442695
        %v443 = vpow.pop %v442
        %v444 = vmul.f32 %v441, 1.442695
        %v445 = vpow.pop %v444
        %v446 = vadd.f32 %v443, 1.0
        %v447 = vadd.f32 %v445, 1.0
        %v448 = vrcp.pop %v446
        %v449 = vmul.f32 1.0, %v448
        %v450 = vrcp.pop %v447
        %v451 = vmul.f32 1.0, %v450
        %v452 = vmul.f32 %v438, %v449
        %v453 = vmul.f32 %v439, %v451
        %454 = vst [vmem:[%s217 + $0x10] sm:$0xff] %v452
        %455 = vst [vmem:[%s217 + $0x18] sm:$0xff] %v453
        %v456 = vpack.c.bf16 %v453, %v452
        %v458 = vunpack.c.l.b16 %v456
        %v459 = vunpack.c.h.b16 %v456
        %v460 = vpack.c.b16 %v458, %v458
        %v461 = vpack.c.b16 %v459, %v459
        %464 = vst [vmem:[#allocation2 + $0x8] sm:$0xf] %v460
        %465 = vst [vmem:[#allocation2 + $0xc] sm:$0xf] %v461
        %v466 = vld [vmem:[%s217] sm:$0xff]
        %v467 = vld [vmem:[%s217 + $0x8] sm:$0xff]
        %v468 = vld [vmem:[%s217 + $0x10] sm:$0xff]
        %v469 = vld [vmem:[%s217 + $0x18] sm:$0xff]
        %470 = vrot.lane.b32.xlu0 %v466, 2
        %v471 = vpop.permute.xlu0 %470
        %472 = vrot.lane.b32.xlu0 %v467, 2
        %v473 = vpop.permute.xlu0 %472
        %474 = vrot.lane.b32.xlu0 %v468, 2
        %v475 = vpop.permute.xlu0 %474
        %476 = vrot.lane.b32.xlu0 %v469, 2
        %v477 = vpop.permute.xlu0 %476
        %v478 = vpack.c.bf16 %v473, %v471
        %v479 = vpack.c.bf16 %v477, %v475
        %v480 = vld [vmem:[#allocation2] sm:$0xf]
        %v481 = vld [vmem:[#allocation2 + $0x4] sm:$0xf]
        %v482 = vld [vmem:[#allocation2 + $0x8] sm:$0xf]
        %v483 = vld [vmem:[#allocation2 + $0xc] sm:$0xf]
        %v484 = vld [vmem:[%s2] sm:$0xf]
        %v485 = vld [vmem:[%s2 + $0x10] sm:$0xf]
        %v486 = vld [vmem:[%s2 + $0x20] sm:$0xf]
        %v487 = vld [vmem:[%s2 + $0x30] sm:$0xf]
        %v488 = vld [vmem:[%s3] sm:$0xf]
        %v489 = vld [vmem:[%s3 + $0x10] sm:$0xf]
        %v490 = vld [vmem:[%s3 + $0x20] sm:$0xf]
        %v491 = vld [vmem:[%s3 + $0x30] sm:$0xf]
        %v496 = vunpack.c.l.b16 %v484
        %v497 = vunpack.c.l.b16 %v485
        %v498 = vunpack.c.l.b16 %v486
        %v499 = vunpack.c.l.b16 %v487
        %v500 = vpack.c.b16 %v497, %v496
        %v501 = vpack.c.b16 %v499, %v498
        %502 = vrot.lane.b32.xlu0 %v500, 112
        %v503 = vpop.permute.xlu0 %502
        %504 = vrot.lane.b32.xlu0 %v501, 112
        %v505 = vpop.permute.xlu0 %504
        %vm506 = vcmask 261120
        %v508 = vsel %vm506, %v503, 0
        %v511 = vsel %vm506, %v505, 0
        %513 = vmatprep.subr.bf16.mxu0 0
        %514 = vmatpush1.bf16.msra.mxu0 0
        %515 = vmatprep.subr.bf16.mxu0 0
        %516 = vmatpush1.bf16.msra.mxu0 0
        %517 = vmatprep.subr.bf16.mxu0 0
        %518 = vmatpush1.bf16.msra.mxu0 0
        %519 = vmatprep.subr.bf16.mxu0 0
        %520 = vmatpush1.bf16.msra.mxu0 0
        %521 = vmatprep.subr.bf16.mxu0 0
        %522 = vmatpush1.bf16.msra.mxu0 0
        %523 = vmatprep.subr.bf16.mxu0 0
        %524 = vmatpush1.bf16.msra.mxu0 0
        %525 = vmatprep.subr.bf16.mxu0 0
        %526 = vmatpush1.bf16.msra.mxu0 %v479
        %527 = vmatprep.subr.bf16.mxu0 0
        %528 = vmatpush1.bf16.msra.mxu0 %v478
        %529 = vmatprep.subr.bf16.mxu0 0
        %530 = vmatpush2.bf16.msra.mxu0 0
        %531 = vmatprep.subr.bf16.mxu0 0
        %532 = vmatpush2.bf16.msra.mxu0 0
        %533 = vmatprep.subr.bf16.mxu0 0
        %534 = vmatpush2.bf16.msra.mxu0 0
        %535 = vmatprep.subr.bf16.mxu0 0
        %536 = vmatpush2.bf16.msra.mxu0 0
        %537 = vmatprep.subr.bf16.mxu0 0
        %538 = vmatpush2.bf16.msra.mxu0 0
        %539 = vmatprep.subr.bf16.mxu0 0
        %540 = vmatpush2.bf16.msra.mxu0 0
        %541 = vmatprep.subr.bf16.mxu0 0
        %542 = vmatpush2.bf16.msra.mxu0 0
        %543 = vmatprep.subr.bf16.mxu0 0
        %544 = vmatpush2.bf16.msra.mxu0 0
        %545 = vmatprep.mubr.bf16.mxu0 0
        %546 = vmatmul.mubr.bf16.gmra.mxu0 %v508
        %v547 = vpop.f32.mrf.mxu0
        %v548 = vadd.f32 0.0, %v547
        %v549 = vpop.f32.mrf.mxu0
        %v550 = vpop.f32.mrf.mxu0
        %v551 = vadd.f32 0.0, %v550
        %v552 = vpop.f32.mrf.mxu0
        %553 = vmatprep.mubr.bf16.mxu0 0
        %554 = vmatmul.mubr.bf16.gmra.mxu0 %v511
        %v555 = vpop.f32.mrf.mxu0
        %v556 = vadd.f32 0.0, %v555
        %v557 = vpop.f32.mrf.mxu0
        %v558 = vpop.f32.mrf.mxu0
        %v559 = vadd.f32 0.0, %v558
        %v560 = vpop.f32.mrf.mxu0
        %561 = vdwg.mxu0
        %v566 = vunpack.c.l.b16 %v488
        %v567 = vunpack.c.l.b16 %v489
        %v568 = vunpack.c.l.b16 %v490
        %v569 = vunpack.c.l.b16 %v491
        %v570 = vpack.c.b16 %v567, %v566
        %v571 = vpack.c.b16 %v569, %v568
        %572 = vrot.lane.b32.xlu0 %v570, 112
        %v573 = vpop.permute.xlu0 %572
        %574 = vrot.lane.b32.xlu0 %v571, 112
        %v575 = vpop.permute.xlu0 %574
        %v580 = vunpack.c.l.b16 %v480
        %v581 = vunpack.c.l.b16 %v481
        %v582 = vunpack.c.l.b16 %v482
        %v583 = vunpack.c.l.b16 %v483
        %v584 = vpack.c.b16 %v581, %v580
        %v585 = vpack.c.b16 %v583, %v582
        %v589 = vsel %vm506, %v573, 0
        %v592 = vsel %vm506, %v575, 0
        %594 = vmatprep.subr.bf16.mxu0 0
        %595 = vmatpush1.bf16.msra.mxu0 0
        %596 = vmatprep.subr.bf16.mxu0 0
        %597 = vmatpush1.bf16.msra.mxu0 0
        %598 = vmatprep.subr.bf16.mxu0 0
        %599 = vmatpush1.bf16.msra.mxu0 0
        %600 = vmatprep.subr.bf16.mxu0 0
        %601 = vmatpush1.bf16.msra.mxu0 0
        %602 = vmatprep.subr.bf16.mxu0 0
        %603 = vmatpush1.bf16.msra.mxu0 0
        %604 = vmatprep.subr.bf16.mxu0 0
        %605 = vmatpush1.bf16.msra.mxu0 0
        %606 = vmatprep.subr.bf16.mxu0 0
        %607 = vmatpush1.bf16.msra.mxu0 %v585
        %608 = vmatprep.subr.bf16.mxu0 0
        %609 = vmatpush1.bf16.msra.mxu0 %v584
        %610 = vmatprep.subr.bf16.mxu0 0
        %611 = vmatpush2.bf16.msra.mxu0 0
        %612 = vmatprep.subr.bf16.mxu0 0
        %613 = vmatpush2.bf16.msra.mxu0 0
        %614 = vmatprep.subr.bf16.mxu0 0
        %615 = vmatpush2.bf16.msra.mxu0 0
        %616 = vmatprep.subr.bf16.mxu0 0
        %617 = vmatpush2.bf16.msra.mxu0 0
        %618 = vmatprep.subr.bf16.mxu0 0
        %619 = vmatpush2.bf16.msra.mxu0 0
        %620 = vmatprep.subr.bf16.mxu0 0
        %621 = vmatpush2.bf16.msra.mxu0 0
        %622 = vmatprep.subr.bf16.mxu0 0
        %623 = vmatpush2.bf16.msra.mxu0 0
        %624 = vmatprep.subr.bf16.mxu0 0
        %625 = vmatpush2.bf16.msra.mxu0 0
        %626 = vmatprep.mubr.bf16.mxu0 0
        %627 = vmatmul.mubr.bf16.gmra.mxu0 %v589
        %v628 = vpop.f32.mrf.mxu0
        %v629 = vadd.f32 0.0, %v628
        %v630 = vpop.f32.mrf.mxu0
        %v631 = vpop.f32.mrf.mxu0
        %v632 = vadd.f32 0.0, %v631
        %v633 = vpop.f32.mrf.mxu0
        %634 = vmatprep.mubr.bf16.mxu0 0
        %635 = vmatmul.mubr.bf16.gmra.mxu0 %v592
        %v636 = vpop.f32.mrf.mxu0
        %v637 = vadd.f32 0.0, %v636
        %v638 = vpop.f32.mrf.mxu0
        %v639 = vpop.f32.mrf.mxu0
        %v640 = vadd.f32 0.0, %v639
        %v641 = vpop.f32.mrf.mxu0
        %642 = vdwg.mxu0
        %vm643 = vcmp.ge.s32.totalorder %v238, 2
        %v644 = vsel %vm643, 1, 0
        %v645 = vcvt.s32.f32 %v644
        %v647 = vlaneseq
        %v648 = vshrl.u32 %v647, 7
        %v649 = vsub.s32 0, %v648
        %v650 = vrot.slane %v645, %v649
        %v652 = vmul.f32 %v548, %v650
        %v653 = vmul.f32 %v551, %v650
        %v654 = vmul.f32 %v556, %v650
        %v655 = vmul.f32 %v559, %v650
        %v656 = vadd.f32 %v652, %v629
        %v657 = vadd.f32 %v653, %v632
        %v658 = vadd.f32 %v654, %v637
        %v659 = vadd.f32 %v655, %v640
        %v660 = vld [vmem:[%s4 + $0x20] sm:$0xff]
        %v661 = vld [vmem:[%s4 + $0x28] sm:$0xff]
        %v662 = vld [vmem:[%s4 + $0x30] sm:$0xff]
        %v663 = vld [vmem:[%s4 + $0x38] sm:$0xff]
        %665 = vset.pattern.permute.xlu0 0
        %666 = vperm.xlu0 %665, %v660
        %v667 = vpop.permute.xlu0 %666
        %670 = vset.pattern.permute.xlu0 0
        %671 = vperm.xlu0 %670, %v661
        %v672 = vpop.permute.xlu0 %671
        %675 = vset.pattern.permute.xlu0 0
        %676 = vperm.xlu0 %675, %v662
        %v677 = vpop.permute.xlu0 %676
        %680 = vset.pattern.permute.xlu0 0
        %681 = vperm.xlu0 %680, %v663
        %v682 = vpop.permute.xlu0 %681
        %v684 = vadd.f32 %v656, %v667
        %v685 = vadd.f32 %v657, %v672
        %v686 = vadd.f32 %v658, %v677
        %v687 = vadd.f32 %v659, %v682
        %v688 = vtanh.pop %v684
        %v689 = vtanh.pop %v685
        %v690 = vxor.u32 %v686, 2147483648
        %v691 = vxor.u32 %v687, 2147483648
        %v692 = vmul.f32 %v690, 1.442695
        %v693 = vpow.pop %v692
        %v694 = vmul.f32 %v691, 1.442695
        %v695 = vpow.pop %v694
        %v696 = vadd.f32 %v693, 1.0
        %v697 = vadd.f32 %v695, 1.0
        %v698 = vrcp.pop %v696
        %v699 = vmul.f32 1.0, %v698
        %v700 = vrcp.pop %v697
        %v701 = vmul.f32 1.0, %v700
        %v702 = vmul.f32 %v688, %v699
        %v703 = vmul.f32 %v689, %v701
        %704 = vst [vmem:[%s217 + $0x20] sm:$0xff] %v702
        %705 = vst [vmem:[%s217 + $0x28] sm:$0xff] %v703
        %v706 = vpack.c.bf16 %v703, %v702
        %v708 = vunpack.c.l.b16 %v706
        %v709 = vunpack.c.h.b16 %v706
        %v710 = vpack.c.b16 %v708, %v708
        %v711 = vpack.c.b16 %v709, %v709
        %714 = vst [vmem:[#allocation2 + $0x10] sm:$0xf] %v710
        %715 = vst [vmem:[#allocation2 + $0x14] sm:$0xf] %v711
        %v716 = vld [vmem:[%s217] sm:$0xff]
        %v717 = vld [vmem:[%s217 + $0x8] sm:$0xff]
        %v718 = vld [vmem:[%s217 + $0x10] sm:$0xff]
        %v719 = vld [vmem:[%s217 + $0x18] sm:$0xff]
        %v720 = vld [vmem:[%s217 + $0x20] sm:$0xff]
        %v721 = vld [vmem:[%s217 + $0x28] sm:$0xff]
        %722 = vrot.lane.b32.xlu0 %v716, 4
        %v723 = vpop.permute.xlu0 %722
        %724 = vrot.lane.b32.xlu0 %v717, 4
        %v725 = vpop.permute.xlu0 %724
        %726 = vrot.lane.b32.xlu0 %v718, 4
        %v727 = vpop.permute.xlu0 %726
        %728 = vrot.lane.b32.xlu0 %v719, 4
        %v729 = vpop.permute.xlu0 %728
        %730 = vrot.lane.b32.xlu0 %v720, 4
        %v731 = vpop.permute.xlu0 %730
        %732 = vrot.lane.b32.xlu0 %v721, 4
        %v733 = vpop.permute.xlu0 %732
        %v734 = vpack.c.bf16 %v725, %v723
        %v735 = vpack.c.bf16 %v729, %v727
        %v736 = vpack.c.bf16 %v733, %v731
        %v737 = vld [vmem:[#allocation2] sm:$0xf]
        %v738 = vld [vmem:[#allocation2 + $0x4] sm:$0xf]
        %v739 = vld [vmem:[#allocation2 + $0x8] sm:$0xf]
        %v740 = vld [vmem:[#allocation2 + $0xc] sm:$0xf]
        %v741 = vld [vmem:[#allocation2 + $0x10] sm:$0xf]
        %v742 = vld [vmem:[#allocation2 + $0x14] sm:$0xf]
        %v743 = vld [vmem:[%s2] sm:$0xf]
        %v744 = vld [vmem:[%s2 + $0x10] sm:$0xf]
        %v745 = vld [vmem:[%s2 + $0x20] sm:$0xf]
        %v746 = vld [vmem:[%s2 + $0x30] sm:$0xf]
        %v747 = vld [vmem:[%s3] sm:$0xf]
        %v748 = vld [vmem:[%s3 + $0x10] sm:$0xf]
        %v749 = vld [vmem:[%s3 + $0x20] sm:$0xf]
        %v750 = vld [vmem:[%s3 + $0x30] sm:$0xf]
        %v755 = vunpack.c.l.b16 %v743
        %v756 = vunpack.c.l.b16 %v744
        %v757 = vunpack.c.l.b16 %v745
        %v758 = vunpack.c.l.b16 %v746
        %v759 = vpack.c.b16 %v756, %v755
        %v760 = vpack.c.b16 %v758, %v757
        %761 = vrot.lane.b32.xlu0 %v759, 80
        %v762 = vpop.permute.xlu0 %761
        %763 = vrot.lane.b32.xlu0 %v760, 80
        %v764 = vpop.permute.xlu0 %763
        %vm765 = vcmask 392192
        %v767 = vsel %vm765, %v762, 0
        %v770 = vsel %vm765, %v764, 0
        %772 = vmatprep.subr.bf16.mxu0 0
        %773 = vmatpush1.bf16.msra.mxu0 0
        %774 = vmatprep.subr.bf16.mxu0 0
        %775 = vmatpush1.bf16.msra.mxu0 0
        %776 = vmatprep.subr.bf16.mxu0 0
        %777 = vmatpush1.bf16.msra.mxu0 0
        %778 = vmatprep.subr.bf16.mxu0 0
        %779 = vmatpush1.bf16.msra.mxu0 0
        %780 = vmatprep.subr.bf16.mxu0 0
        %781 = vmatpush1.bf16.msra.mxu0 0
        %782 = vmatprep.subr.bf16.mxu0 0
        %783 = vmatpush1.bf16.msra.mxu0 %v736
        %784 = vmatprep.subr.bf16.mxu0 0
        %785 = vmatpush1.bf16.msra.mxu0 %v735
        %786 = vmatprep.subr.bf16.mxu0 0
        %787 = vmatpush1.bf16.msra.mxu0 %v734
        %788 = vmatprep.subr.bf16.mxu0 0
        %789 = vmatpush2.bf16.msra.mxu0 0
        %790 = vmatprep.subr.bf16.mxu0 0
        %791 = vmatpush2.bf16.msra.mxu0 0
        %792 = vmatprep.subr.bf16.mxu0 0
        %793 = vmatpush2.bf16.msra.mxu0 0
        %794 = vmatprep.subr.bf16.mxu0 0
        %795 = vmatpush2.bf16.msra.mxu0 0
        %796 = vmatprep.subr.bf16.mxu0 0
        %797 = vmatpush2.bf16.msra.mxu0 0
        %798 = vmatprep.subr.bf16.mxu0 0
        %799 = vmatpush2.bf16.msra.mxu0 0
        %800 = vmatprep.subr.bf16.mxu0 0
        %801 = vmatpush2.bf16.msra.mxu0 0
        %802 = vmatprep.subr.bf16.mxu0 0
        %803 = vmatpush2.bf16.msra.mxu0 0
        %804 = vmatprep.mubr.bf16.mxu0 0
        %805 = vmatmul.mubr.bf16.gmra.mxu0 %v767
        %v806 = vpop.f32.mrf.mxu0
        %v807 = vadd.f32 0.0, %v806
        %v808 = vpop.f32.mrf.mxu0
        %v809 = vpop.f32.mrf.mxu0
        %v810 = vadd.f32 0.0, %v809
        %v811 = vpop.f32.mrf.mxu0
        %812 = vmatprep.mubr.bf16.mxu0 0
        %813 = vmatmul.mubr.bf16.gmra.mxu0 %v770
        %v814 = vpop.f32.mrf.mxu0
        %v815 = vadd.f32 0.0, %v814
        %v816 = vpop.f32.mrf.mxu0
        %v817 = vpop.f32.mrf.mxu0
        %v818 = vadd.f32 0.0, %v817
        %v819 = vpop.f32.mrf.mxu0
        %820 = vdwg.mxu0
        %v825 = vunpack.c.l.b16 %v747
        %v826 = vunpack.c.l.b16 %v748
        %v827 = vunpack.c.l.b16 %v749
        %v828 = vunpack.c.l.b16 %v750
        %v829 = vpack.c.b16 %v826, %v825
        %v830 = vpack.c.b16 %v828, %v827
        %831 = vrot.lane.b32.xlu0 %v829, 80
        %v832 = vpop.permute.xlu0 %831
        %833 = vrot.lane.b32.xlu0 %v830, 80
        %v834 = vpop.permute.xlu0 %833
        %v841 = vunpack.c.l.b16 %v737
        %v842 = vunpack.c.l.b16 %v738
        %v843 = vunpack.c.l.b16 %v739
        %v844 = vunpack.c.l.b16 %v740
        %v845 = vunpack.c.l.b16 %v741
        %v846 = vunpack.c.l.b16 %v742
        %v847 = vpack.c.b16 %v842, %v841
        %v848 = vpack.c.b16 %v844, %v843
        %v849 = vpack.c.b16 %v846, %v845
        %v854 = vsel %vm765, %v832, 0
        %v857 = vsel %vm765, %v834, 0
        %859 = vmatprep.subr.bf16.mxu0 0
        %860 = vmatpush1.bf16.msra.mxu0 0
        %861 = vmatprep.subr.bf16.mxu0 0
        %862 = vmatpush1.bf16.msra.mxu0 0
        %863 = vmatprep.subr.bf16.mxu0 0
        %864 = vmatpush1.bf16.msra.mxu0 0
        %865 = vmatprep.subr.bf16.mxu0 0
        %866 = vmatpush1.bf16.msra.mxu0 0
        %867 = vmatprep.subr.bf16.mxu0 0
        %868 = vmatpush1.bf16.msra.mxu0 0
        %869 = vmatprep.subr.bf16.mxu0 0
        %870 = vmatpush1.bf16.msra.mxu0 %v849
        %871 = vmatprep.subr.bf16.mxu0 0
        %872 = vmatpush1.bf16.msra.mxu0 %v848
        %873 = vmatprep.subr.bf16.mxu0 0
        %874 = vmatpush1.bf16.msra.mxu0 %v847
        %875 = vmatprep.subr.bf16.mxu0 0
        %876 = vmatpush2.bf16.msra.mxu0 0
        %877 = vmatprep.subr.bf16.mxu0 0
        %878 = vmatpush2.bf16.msra.mxu0 0
        %879 = vmatprep.subr.bf16.mxu0 0
        %880 = vmatpush2.bf16.msra.mxu0 0
        %881 = vmatprep.subr.bf16.mxu0 0
        %882 = vmatpush2.bf16.msra.mxu0 0
        %883 = vmatprep.subr.bf16.mxu0 0
        %884 = vmatpush2.bf16.msra.mxu0 0
        %885 = vmatprep.subr.bf16.mxu0 0
        %886 = vmatpush2.bf16.msra.mxu0 0
        %887 = vmatprep.subr.bf16.mxu0 0
        %888 = vmatpush2.bf16.msra.mxu0 0
        %889 = vmatprep.subr.bf16.mxu0 0
        %890 = vmatpush2.bf16.msra.mxu0 0
        %891 = vmatprep.mubr.bf16.mxu0 0
        %892 = vmatmul.mubr.bf16.gmra.mxu0 %v854
        %v893 = vpop.f32.mrf.mxu0
        %v894 = vadd.f32 0.0, %v893
        %v895 = vpop.f32.mrf.mxu0
        %v896 = vpop.f32.mrf.mxu0
        %v897 = vadd.f32 0.0, %v896
        %v898 = vpop.f32.mrf.mxu0
        %899 = vmatprep.mubr.bf16.mxu0 0
        %900 = vmatmul.mubr.bf16.gmra.mxu0 %v857
        %v901 = vpop.f32.mrf.mxu0
        %v902 = vadd.f32 0.0, %v901
        %v903 = vpop.f32.mrf.mxu0
        %v904 = vpop.f32.mrf.mxu0
        %v905 = vadd.f32 0.0, %v904
        %v906 = vpop.f32.mrf.mxu0
        %907 = vdwg.mxu0
        %vm908 = vcmp.ge.s32.totalorder %v238, 4
        %v909 = vsel %vm908, 1, 0
        %v910 = vcvt.s32.f32 %v909
        %v912 = vlaneseq
        %v913 = vshrl.u32 %v912, 7
        %v914 = vsub.s32 0, %v913
        %v915 = vrot.slane %v910, %v914
        %v917 = vmul.f32 %v807, %v915
        %v918 = vmul.f32 %v810, %v915
        %v919 = vmul.f32 %v815, %v915
        %v920 = vmul.f32 %v818, %v915
        %v921 = vadd.f32 %v917, %v894
        %v922 = vadd.f32 %v918, %v897
        %v923 = vadd.f32 %v919, %v902
        %v924 = vadd.f32 %v920, %v905
        %v925 = vld [vmem:[%s4 + $0x40] sm:$0xff]
        %v926 = vld [vmem:[%s4 + $0x48] sm:$0xff]
        %v927 = vld [vmem:[%s4 + $0x50] sm:$0xff]
        %v928 = vld [vmem:[%s4 + $0x58] sm:$0xff]
        %930 = vset.pattern.permute.xlu0 0
        %931 = vperm.xlu0 %930, %v925
        %v932 = vpop.permute.xlu0 %931
        %935 = vset.pattern.permute.xlu0 0
        %936 = vperm.xlu0 %935, %v926
        %v937 = vpop.permute.xlu0 %936
        %940 = vset.pattern.permute.xlu0 0
        %941 = vperm.xlu0 %940, %v927
        %v942 = vpop.permute.xlu0 %941
        %945 = vset.pattern.permute.xlu0 0
        %946 = vperm.xlu0 %945, %v928
        %v947 = vpop.permute.xlu0 %946
        %v949 = vadd.f32 %v921, %v932
        %v950 = vadd.f32 %v922, %v937
        %v951 = vadd.f32 %v923, %v942
        %v952 = vadd.f32 %v924, %v947
        %v953 = vtanh.pop %v949
        %v954 = vtanh.pop %v950
        %v955 = vxor.u32 %v951, 2147483648
        %v956 = vxor.u32 %v952, 2147483648
        %v957 = vmul.f32 %v955, 1.442695
        %v958 = vpow.pop %v957
        %v959 = vmul.f32 %v956, 1.442695
        %v960 = vpow.pop %v959
        %v961 = vadd.f32 %v958, 1.0
        %v962 = vadd.f32 %v960, 1.0
        %v963 = vrcp.pop %v961
        %v964 = vmul.f32 1.0, %v963
        %v965 = vrcp.pop %v962
        %v966 = vmul.f32 1.0, %v965
        %v967 = vmul.f32 %v953, %v964
        %v968 = vmul.f32 %v954, %v966
        %969 = vst [vmem:[%s217 + $0x30] sm:$0xff] %v967
        %970 = vst [vmem:[%s217 + $0x38] sm:$0xff] %v968
        %v971 = vpack.c.bf16 %v968, %v967
        %v973 = vunpack.c.l.b16 %v971
        %v974 = vunpack.c.h.b16 %v971
        %v975 = vpack.c.b16 %v973, %v973
        %v976 = vpack.c.b16 %v974, %v974
        %979 = vst [vmem:[#allocation2 + $0x18] sm:$0xf] %v975
        %980 = vst [vmem:[#allocation2 + $0x1c] sm:$0xf] %v976
        %v981 = vld [vmem:[%s217] sm:$0xff]
        %v982 = vld [vmem:[%s217 + $0x8] sm:$0xff]
        %v983 = vld [vmem:[%s217 + $0x10] sm:$0xff]
        %v984 = vld [vmem:[%s217 + $0x18] sm:$0xff]
        %v985 = vld [vmem:[%s217 + $0x20] sm:$0xff]
        %v986 = vld [vmem:[%s217 + $0x28] sm:$0xff]
        %v987 = vld [vmem:[%s217 + $0x30] sm:$0xff]
        %v988 = vld [vmem:[%s217 + $0x38] sm:$0xff]
        %989 = vrot.lane.b32.xlu0 %v981, 8
        %v990 = vpop.permute.xlu0 %989
        %991 = vrot.lane.b32.xlu0 %v982, 8
        %v992 = vpop.permute.xlu0 %991
        %993 = vrot.lane.b32.xlu0 %v983, 8
        %v994 = vpop.permute.xlu0 %993
        %995 = vrot.lane.b32.xlu0 %v984, 8
        %v996 = vpop.permute.xlu0 %995
        %997 = vrot.lane.b32.xlu0 %v985, 8
        %v998 = vpop.permute.xlu0 %997
        %999 = vrot.lane.b32.xlu0 %v986, 8
        %v1000 = vpop.permute.xlu0 %999
        %1001 = vrot.lane.b32.xlu0 %v987, 8
        %v1002 = vpop.permute.xlu0 %1001
        %1003 = vrot.lane.b32.xlu0 %v988, 8
        %v1004 = vpop.permute.xlu0 %1003
        %v1005 = vpack.c.bf16 %v992, %v990
        %v1006 = vpack.c.bf16 %v996, %v994
        %v1007 = vpack.c.bf16 %v1000, %v998
        %v1008 = vpack.c.bf16 %v1004, %v1002
        %v1009 = vld [vmem:[#allocation2] sm:$0xf]
        %v1010 = vld [vmem:[#allocation2 + $0x4] sm:$0xf]
        %v1011 = vld [vmem:[#allocation2 + $0x8] sm:$0xf]
        %v1012 = vld [vmem:[#allocation2 + $0xc] sm:$0xf]
        %v1013 = vld [vmem:[#allocation2 + $0x10] sm:$0xf]
        %v1014 = vld [vmem:[#allocation2 + $0x14] sm:$0xf]
        %v1015 = vld [vmem:[#allocation2 + $0x18] sm:$0xf]
        %v1016 = vld [vmem:[#allocation2 + $0x1c] sm:$0xf]
        %v1017 = vld [vmem:[%s2] sm:$0xff]
        %v1018 = vld [vmem:[%s2 + $0x10] sm:$0xff]
        %v1019 = vld [vmem:[%s2 + $0x20] sm:$0xff]
        %v1020 = vld [vmem:[%s2 + $0x30] sm:$0xff]
        %v1021 = vld [vmem:[%s3] sm:$0xff]
        %v1022 = vld [vmem:[%s3 + $0x10] sm:$0xff]
        %v1023 = vld [vmem:[%s3 + $0x20] sm:$0xff]
        %v1024 = vld [vmem:[%s3 + $0x30] sm:$0xff]
        %v1029 = vunpack.c.l.b16 %v1017
        %v1030 = vunpack.c.h.b16 %v1017
        %v1031 = vunpack.c.l.b16 %v1018
        %v1032 = vunpack.c.h.b16 %v1018
        %v1033 = vunpack.c.l.b16 %v1019
        %v1034 = vunpack.c.h.b16 %v1019
        %v1035 = vunpack.c.l.b16 %v1020
        %v1036 = vunpack.c.h.b16 %v1020
        %v1037 = vpack.c.b16 %v1031, %v1029
        %v1038 = vpack.c.b16 %v1032, %v1030
        %v1039 = vpack.c.b16 %v1035, %v1033
        %v1040 = vpack.c.b16 %v1036, %v1034
        %1041 = vrot.lane.b32.xlu0 %v1037, 32
        %v1042 = vpop.permute.xlu0 %1041
        %1043 = vrot.lane.b32.xlu0 %v1038, 32
        %v1044 = vpop.permute.xlu0 %1043
        %1045 = vrot.lane.b32.xlu0 %v1039, 32
        %v1046 = vpop.permute.xlu0 %1045
        %1047 = vrot.lane.b32.xlu0 %v1040, 32
        %v1048 = vpop.permute.xlu0 %1047
        %vm1049 = vcmask 261120
        %v1050 = vsel %vm1049, %v1042, %v1044
        %v1051 = vsel %vm1049, %v1046, %v1048
        %vm1052 = vcmask 523264
        %v1054 = vsel %vm1052, %v1050, 0
        %v1057 = vsel %vm1052, %v1051, 0
        %1059 = vmatprep.subr.bf16.mxu0 0
        %1060 = vmatpush1.bf16.msra.mxu0 0
        %1061 = vmatprep.subr.bf16.mxu0 0
        %1062 = vmatpush1.bf16.msra.mxu0 0
        %1063 = vmatprep.subr.bf16.mxu0 0
        %1064 = vmatpush1.bf16.msra.mxu0 0
        %1065 = vmatprep.subr.bf16.mxu0 0
        %1066 = vmatpush1.bf16.msra.mxu0 0
        %1067 = vmatprep.subr.bf16.mxu0 0
        %1068 = vmatpush1.bf16.msra.mxu0 %v1008
        %1069 = vmatprep.subr.bf16.mxu0 0
        %1070 = vmatpush1.bf16.msra.mxu0 %v1007
        %1071 = vmatprep.subr.bf16.mxu0 0
        %1072 = vmatpush1.bf16.msra.mxu0 %v1006
        %1073 = vmatprep.subr.bf16.mxu0 0
        %1074 = vmatpush1.bf16.msra.mxu0 %v1005
        %1075 = vmatprep.subr.bf16.mxu0 0
        %1076 = vmatpush2.bf16.msra.mxu0 0
        %1077 = vmatprep.subr.bf16.mxu0 0
        %1078 = vmatpush2.bf16.msra.mxu0 0
        %1079 = vmatprep.subr.bf16.mxu0 0
        %1080 = vmatpush2.bf16.msra.mxu0 0
        %1081 = vmatprep.subr.bf16.mxu0 0
        %1082 = vmatpush2.bf16.msra.mxu0 0
        %1083 = vmatprep.subr.bf16.mxu0 0
        %1084 = vmatpush2.bf16.msra.mxu0 0
        %1085 = vmatprep.subr.bf16.mxu0 0
        %1086 = vmatpush2.bf16.msra.mxu0 0
        %1087 = vmatprep.subr.bf16.mxu0 0
        %1088 = vmatpush2.bf16.msra.mxu0 0
        %1089 = vmatprep.subr.bf16.mxu0 0
        %1090 = vmatpush2.bf16.msra.mxu0 0
        %1091 = vmatprep.mubr.bf16.mxu0 0
        %1092 = vmatmul.mubr.bf16.gmra.mxu0 %v1054
        %v1093 = vpop.f32.mrf.mxu0
        %v1094 = vadd.f32 0.0, %v1093
        %v1095 = vpop.f32.mrf.mxu0
        %v1096 = vpop.f32.mrf.mxu0
        %v1097 = vadd.f32 0.0, %v1096
        %v1098 = vpop.f32.mrf.mxu0
        %1099 = vmatprep.mubr.bf16.mxu0 0
        %1100 = vmatmul.mubr.bf16.gmra.mxu0 %v1057
        %v1101 = vpop.f32.mrf.mxu0
        %v1102 = vadd.f32 0.0, %v1101
        %v1103 = vpop.f32.mrf.mxu0
        %v1104 = vpop.f32.mrf.mxu0
        %v1105 = vadd.f32 0.0, %v1104
        %v1106 = vpop.f32.mrf.mxu0
        %1107 = vdwg.mxu0
        %v1112 = vunpack.c.l.b16 %v1021
        %v1113 = vunpack.c.h.b16 %v1021
        %v1114 = vunpack.c.l.b16 %v1022
        %v1115 = vunpack.c.h.b16 %v1022
        %v1116 = vunpack.c.l.b16 %v1023
        %v1117 = vunpack.c.h.b16 %v1023
        %v1118 = vunpack.c.l.b16 %v1024
        %v1119 = vunpack.c.h.b16 %v1024
        %v1120 = vpack.c.b16 %v1114, %v1112
        %v1121 = vpack.c.b16 %v1115, %v1113
        %v1122 = vpack.c.b16 %v1118, %v1116
        %v1123 = vpack.c.b16 %v1119, %v1117
        %1124 = vrot.lane.b32.xlu0 %v1120, 32
        %v1125 = vpop.permute.xlu0 %1124
        %1126 = vrot.lane.b32.xlu0 %v1121, 32
        %v1127 = vpop.permute.xlu0 %1126
        %1128 = vrot.lane.b32.xlu0 %v1122, 32
        %v1129 = vpop.permute.xlu0 %1128
        %1130 = vrot.lane.b32.xlu0 %v1123, 32
        %v1131 = vpop.permute.xlu0 %1130
        %v1132 = vsel %vm1049, %v1125, %v1127
        %v1133 = vsel %vm1049, %v1129, %v1131
        %v1142 = vunpack.c.l.b16 %v1009
        %v1143 = vunpack.c.l.b16 %v1010
        %v1144 = vunpack.c.l.b16 %v1011
        %v1145 = vunpack.c.l.b16 %v1012
        %v1146 = vunpack.c.l.b16 %v1013
        %v1147 = vunpack.c.l.b16 %v1014
        %v1148 = vunpack.c.l.b16 %v1015
        %v1149 = vunpack.c.l.b16 %v1016
        %v1150 = vpack.c.b16 %v1143, %v1142
        %v1151 = vpack.c.b16 %v1145, %v1144
        %v1152 = vpack.c.b16 %v1147, %v1146
        %v1153 = vpack.c.b16 %v1149, %v1148
        %v1159 = vsel %vm1052, %v1132, 0
        %v1162 = vsel %vm1052, %v1133, 0
        %1164 = vmatprep.subr.bf16.mxu0 0
        %1165 = vmatpush1.bf16.msra.mxu0 0
        %1166 = vmatprep.subr.bf16.mxu0 0
        %1167 = vmatpush1.bf16.msra.mxu0 0
        %1168 = vmatprep.subr.bf16.mxu0 0
        %1169 = vmatpush1.bf16.msra.mxu0 0
        %1170 = vmatprep.subr.bf16.mxu0 0
        %1171 = vmatpush1.bf16.msra.mxu0 0
        %1172 = vmatprep.subr.bf16.mxu0 0
        %1173 = vmatpush1.bf16.msra.mxu0 %v1153
        %1174 = vmatprep.subr.bf16.mxu0 0
        %1175 = vmatpush1.bf16.msra.mxu0 %v1152
        %1176 = vmatprep.subr.bf16.mxu0 0
        %1177 = vmatpush1.bf16.msra.mxu0 %v1151
        %1178 = vmatprep.subr.bf16.mxu0 0
        %1179 = vmatpush1.bf16.msra.mxu0 %v1150
        %1180 = vmatprep.subr.bf16.mxu0 0
        %1181 = vmatpush2.bf16.msra.mxu0 0
        %1182 = vmatprep.subr.bf16.mxu0 0
        %1183 = vmatpush2.bf16.msra.mxu0 0
        %1184 = vmatprep.subr.bf16.mxu0 0
        %1185 = vmatpush2.bf16.msra.mxu0 0
        %1186 = vmatprep.subr.bf16.mxu0 0
        %1187 = vmatpush2.bf16.msra.mxu0 0
        %1188 = vmatprep.subr.bf16.mxu0 0
        %1189 = vmatpush2.bf16.msra.mxu0 0
        %1190 = vmatprep.subr.bf16.mxu0 0
        %1191 = vmatpush2.bf16.msra.mxu0 0
        %1192 = vmatprep.subr.bf16.mxu0 0
        %1193 = vmatpush2.bf16.msra.mxu0 0
        %1194 = vmatprep.subr.bf16.mxu0 0
        %1195 = vmatpush2.bf16.msra.mxu0 0
        %1196 = vmatprep.mubr.bf16.mxu0 0
        %1197 = vmatmul.mubr.bf16.gmra.mxu0 %v1159
        %v1198 = vpop.f32.mrf.mxu0
        %v1199 = vadd.f32 0.0, %v1198
        %v1200 = vpop.f32.mrf.mxu0
        %v1201 = vpop.f32.mrf.mxu0
        %v1202 = vadd.f32 0.0, %v1201
        %v1203 = vpop.f32.mrf.mxu0
        %1204 = vmatprep.mubr.bf16.mxu0 0
        %1205 = vmatmul.mubr.bf16.gmra.mxu0 %v1162
        %v1206 = vpop.f32.mrf.mxu0
        %v1207 = vadd.f32 0.0, %v1206
        %v1208 = vpop.f32.mrf.mxu0
        %v1209 = vpop.f32.mrf.mxu0
        %v1210 = vadd.f32 0.0, %v1209
        %v1211 = vpop.f32.mrf.mxu0
        %1212 = vdwg.mxu0
        %vm1213 = vcmp.ge.s32.totalorder %v238, 8
        %v1214 = vsel %vm1213, 1, 0
        %v1215 = vcvt.s32.f32 %v1214
        %v1217 = vlaneseq
        %v1218 = vshrl.u32 %v1217, 7
        %v1219 = vsub.s32 0, %v1218
        %v1220 = vrot.slane %v1215, %v1219
        %v1222 = vmul.f32 %v1094, %v1220
        %v1223 = vmul.f32 %v1097, %v1220
        %v1224 = vmul.f32 %v1102, %v1220
        %v1225 = vmul.f32 %v1105, %v1220
        %v1226 = vadd.f32 %v1222, %v1199
        %v1227 = vadd.f32 %v1223, %v1202
        %v1228 = vadd.f32 %v1224, %v1207
        %v1229 = vadd.f32 %v1225, %v1210
        %v1230 = vld [vmem:[%s4 + $0x60] sm:$0xff]
        %v1231 = vld [vmem:[%s4 + $0x68] sm:$0xff]
        %v1232 = vld [vmem:[%s4 + $0x70] sm:$0xff]
        %v1233 = vld [vmem:[%s4 + $0x78] sm:$0xff]
        %1235 = vset.pattern.permute.xlu0 0
        %1236 = vperm.xlu0 %1235, %v1230
        %v1237 = vpop.permute.xlu0 %1236
        %1240 = vset.pattern.permute.xlu0 0
        %1241 = vperm.xlu0 %1240, %v1231
        %v1242 = vpop.permute.xlu0 %1241
        %1245 = vset.pattern.permute.xlu0 0
        %1246 = vperm.xlu0 %1245, %v1232
        %v1247 = vpop.permute.xlu0 %1246
        %1250 = vset.pattern.permute.xlu0 0
        %1251 = vperm.xlu0 %1250, %v1233
        %v1252 = vpop.permute.xlu0 %1251
        %v1254 = vadd.f32 %v1226, %v1237
        %v1255 = vadd.f32 %v1227, %v1242
        %v1256 = vadd.f32 %v1228, %v1247
        %v1257 = vadd.f32 %v1229, %v1252
        %v1258 = vtanh.pop %v1254
        %v1259 = vtanh.pop %v1255
        %v1260 = vxor.u32 %v1256, 2147483648
        %v1261 = vxor.u32 %v1257, 2147483648
        %v1262 = vmul.f32 %v1260, 1.442695
        %v1263 = vpow.pop %v1262
        %v1264 = vmul.f32 %v1261, 1.442695
        %v1265 = vpow.pop %v1264
        %v1266 = vadd.f32 %v1263, 1.0
        %v1267 = vadd.f32 %v1265, 1.0
        %v1268 = vrcp.pop %v1266
        %v1269 = vmul.f32 1.0, %v1268
        %v1270 = vrcp.pop %v1267
        %v1271 = vmul.f32 1.0, %v1270
        %v1272 = vmul.f32 %v1258, %v1269
        %v1273 = vmul.f32 %v1259, %v1271
        %1274 = vst [vmem:[%s217 + $0x40] sm:$0xff] %v1272
        %1275 = vst [vmem:[%s217 + $0x48] sm:$0xff] %v1273
        %v1276 = vpack.c.bf16 %v1273, %v1272
        %v1278 = vunpack.c.l.b16 %v1276
        %v1279 = vunpack.c.h.b16 %v1276
        %v1280 = vpack.c.b16 %v1278, %v1278
        %v1281 = vpack.c.b16 %v1279, %v1279
        %1284 = vst [vmem:[#allocation2 + $0x20] sm:$0xf] %v1280
        %1285 = vst [vmem:[#allocation2 + $0x24] sm:$0xf] %v1281
        %v1286 = vld [vmem:[%s217] sm:$0xff]
        %v1287 = vld [vmem:[%s217 + $0x8] sm:$0xff]
        %v1288 = vld [vmem:[%s217 + $0x10] sm:$0xff]
        %v1289 = vld [vmem:[%s217 + $0x18] sm:$0xff]
        %v1290 = vld [vmem:[%s217 + $0x20] sm:$0xff]
        %v1291 = vld [vmem:[%s217 + $0x28] sm:$0xff]
        %v1292 = vld [vmem:[%s217 + $0x30] sm:$0xff]
        %v1293 = vld [vmem:[%s217 + $0x38] sm:$0xff]
        %v1294 = vld [vmem:[%s217 + $0x40] sm:$0xff]
        %v1295 = vld [vmem:[%s217 + $0x48] sm:$0xff]
        %1296 = vrot.lane.b32.xlu0 %v1286, 16
        %v1297 = vpop.permute.xlu0 %1296
        %1298 = vrot.lane.b32.xlu0 %v1287, 16
        %v1299 = vpop.permute.xlu0 %1298
        %1300 = vrot.lane.b32.xlu0 %v1288, 16
        %v1301 = vpop.permute.xlu0 %1300
        %1302 = vrot.lane.b32.xlu0 %v1289, 16
        %v1303 = vpop.permute.xlu0 %1302
        %1304 = vrot.lane.b32.xlu0 %v1290, 16
        %v1305 = vpop.permute.xlu0 %1304
        %1306 = vrot.lane.b32.xlu0 %v1291, 16
        %v1307 = vpop.permute.xlu0 %1306
        %1308 = vrot.lane.b32.xlu0 %v1292, 16
        %v1309 = vpop.permute.xlu0 %1308
        %1310 = vrot.lane.b32.xlu0 %v1293, 16
        %v1311 = vpop.permute.xlu0 %1310
        %1312 = vrot.lane.b32.xlu0 %v1294, 16
        %v1313 = vpop.permute.xlu0 %1312
        %1314 = vrot.lane.b32.xlu0 %v1295, 16
        %v1315 = vpop.permute.xlu0 %1314
        %v1316 = vpack.c.bf16 %v1299, %v1297
        %v1317 = vpack.c.bf16 %v1303, %v1301
        %v1318 = vpack.c.bf16 %v1307, %v1305
        %v1319 = vpack.c.bf16 %v1311, %v1309
        %v1320 = vpack.c.bf16 %v1315, %v1313
        %v1321 = vld [vmem:[#allocation2] sm:$0xf]
        %v1322 = vld [vmem:[#allocation2 + $0x4] sm:$0xf]
        %v1323 = vld [vmem:[#allocation2 + $0x8] sm:$0xf]
        %v1324 = vld [vmem:[#allocation2 + $0xc] sm:$0xf]
        %v1325 = vld [vmem:[#allocation2 + $0x10] sm:$0xf]
        %v1326 = vld [vmem:[#allocation2 + $0x14] sm:$0xf]
        %v1327 = vld [vmem:[#allocation2 + $0x18] sm:$0xf]
        %v1328 = vld [vmem:[#allocation2 + $0x1c] sm:$0xf]
        %v1329 = vld [vmem:[#allocation2 + $0x20] sm:$0xf]
        %v1330 = vld [vmem:[#allocation2 + $0x24] sm:$0xf]
        %v1331 = vld [vmem:[%s2 + $0x4] sm:$0xf]
        %v1332 = vld [vmem:[%s2 + $0x14] sm:$0xf]
        %v1333 = vld [vmem:[%s2 + $0x24] sm:$0xf]
        %v1334 = vld [vmem:[%s2 + $0x34] sm:$0xf]
        %v1335 = vld [vmem:[%s3 + $0x4] sm:$0xf]
        %v1336 = vld [vmem:[%s3 + $0x14] sm:$0xf]
        %v1337 = vld [vmem:[%s3 + $0x24] sm:$0xf]
        %v1338 = vld [vmem:[%s3 + $0x34] sm:$0xf]
        %v1343 = vunpack.c.l.b16 %v1331
        %v1344 = vunpack.c.l.b16 %v1332
        %v1345 = vunpack.c.l.b16 %v1333
        %v1346 = vunpack.c.l.b16 %v1334
        %v1347 = vpack.c.b16 %v1344, %v1343
        %v1348 = vpack.c.b16 %v1346, %v1345
        %1349 = vrot.lane.b32.xlu0 %v1347, 96
        %v1350 = vpop.permute.xlu0 %1349
        %1351 = vrot.lane.b32.xlu0 %v1348, 96
        %v1352 = vpop.permute.xlu0 %1351
        %vm1353 = vcmask 654336
        %v1355 = vsel %vm1353, %v1350, 0
        %v1358 = vsel %vm1353, %v1352, 0
        %1360 = vmatprep.subr.bf16.mxu0 0
        %1361 = vmatpush1.bf16.msra.mxu0 0
        %1362 = vmatprep.subr.bf16.mxu0 0
        %1363 = vmatpush1.bf16.msra.mxu0 0
        %1364 = vmatprep.subr.bf16.mxu0 0
        %1365 = vmatpush1.bf16.msra.mxu0 0
        %1366 = vmatprep.subr.bf16.mxu0 0
        %1367 = vmatpush1.bf16.msra.mxu0 %v1320
        %1368 = vmatprep.subr.bf16.mxu0 0
        %1369 = vmatpush1.bf16.msra.mxu0 %v1319
        %1370 = vmatprep.subr.bf16.mxu0 0
        %1371 = vmatpush1.bf16.msra.mxu0 %v1318
        %1372 = vmatprep.subr.bf16.mxu0 0
        %1373 = vmatpush1.bf16.msra.mxu0 %v1317
        %1374 = vmatprep.subr.bf16.mxu0 0
        %1375 = vmatpush1.bf16.msra.mxu0 %v1316
        %1376 = vmatprep.subr.bf16.mxu0 0
        %1377 = vmatpush2.bf16.msra.mxu0 0
        %1378 = vmatprep.subr.bf16.mxu0 0
        %1379 = vmatpush2.bf16.msra.mxu0 0
        %1380 = vmatprep.subr.bf16.mxu0 0
        %1381 = vmatpush2.bf16.msra.mxu0 0
        %1382 = vmatprep.subr.bf16.mxu0 0
        %1383 = vmatpush2.bf16.msra.mxu0 0
        %1384 = vmatprep.subr.bf16.mxu0 0
        %1385 = vmatpush2.bf16.msra.mxu0 0
        %1386 = vmatprep.subr.bf16.mxu0 0
        %1387 = vmatpush2.bf16.msra.mxu0 0
        %1388 = vmatprep.subr.bf16.mxu0 0
        %1389 = vmatpush2.bf16.msra.mxu0 0
        %1390 = vmatprep.subr.bf16.mxu0 0
        %1391 = vmatpush2.bf16.msra.mxu0 0
        %1392 = vmatprep.mubr.bf16.mxu0 0
        %1393 = vmatmul.mubr.bf16.gmra.mxu0 %v1355
        %v1394 = vpop.f32.mrf.mxu0
        %v1395 = vadd.f32 0.0, %v1394
        %v1396 = vpop.f32.mrf.mxu0
        %v1397 = vpop.f32.mrf.mxu0
        %v1398 = vadd.f32 0.0, %v1397
        %v1399 = vpop.f32.mrf.mxu0
        %1400 = vmatprep.mubr.bf16.mxu0 0
        %1401 = vmatmul.mubr.bf16.gmra.mxu0 %v1358
        %v1402 = vpop.f32.mrf.mxu0
        %v1403 = vadd.f32 0.0, %v1402
        %v1404 = vpop.f32.mrf.mxu0
        %v1405 = vpop.f32.mrf.mxu0
        %v1406 = vadd.f32 0.0, %v1405
        %v1407 = vpop.f32.mrf.mxu0
        %1408 = vdwg.mxu0
        %v1413 = vunpack.c.l.b16 %v1335
        %v1414 = vunpack.c.l.b16 %v1336
        %v1415 = vunpack.c.l.b16 %v1337
        %v1416 = vunpack.c.l.b16 %v1338
        %v1417 = vpack.c.b16 %v1414, %v1413
        %v1418 = vpack.c.b16 %v1416, %v1415
        %1419 = vrot.lane.b32.xlu0 %v1417, 96
        %v1420 = vpop.permute.xlu0 %1419
        %1421 = vrot.lane.b32.xlu0 %v1418, 96
        %v1422 = vpop.permute.xlu0 %1421
        %v1433 = vunpack.c.l.b16 %v1321
        %v1434 = vunpack.c.l.b16 %v1322
        %v1435 = vunpack.c.l.b16 %v1323
        %v1436 = vunpack.c.l.b16 %v1324
        %v1437 = vunpack.c.l.b16 %v1325
        %v1438 = vunpack.c.l.b16 %v1326
        %v1439 = vunpack.c.l.b16 %v1327
        %v1440 = vunpack.c.l.b16 %v1328
        %v1441 = vunpack.c.l.b16 %v1329
        %v1442 = vunpack.c.l.b16 %v1330
        %v1443 = vpack.c.b16 %v1434, %v1433
        %v1444 = vpack.c.b16 %v1436, %v1435
        %v1445 = vpack.c.b16 %v1438, %v1437
        %v1446 = vpack.c.b16 %v1440, %v1439
        %v1447 = vpack.c.b16 %v1442, %v1441
        %v1454 = vsel %vm1353, %v1420, 0
        %v1457 = vsel %vm1353, %v1422, 0
        %1459 = vmatprep.subr.bf16.mxu0 0
        %1460 = vmatpush1.bf16.msra.mxu0 0
        %1461 = vmatprep.subr.bf16.mxu0 0
        %1462 = vmatpush1.bf16.msra.mxu0 0
        %1463 = vmatprep.subr.bf16.mxu0 0
        %1464 = vmatpush1.bf16.msra.mxu0 0
        %1465 = vmatprep.subr.bf16.mxu0 0
        %1466 = vmatpush1.bf16.msra.mxu0 %v1447
        %1467 = vmatprep.subr.bf16.mxu0 0
        %1468 = vmatpush1.bf16.msra.mxu0 %v1446
        %1469 = vmatprep.subr.bf16.mxu0 0
        %1470 = vmatpush1.bf16.msra.mxu0 %v1445
        %1471 = vmatprep.subr.bf16.mxu0 0
        %1472 = vmatpush1.bf16.msra.mxu0 %v1444
        %1473 = vmatprep.subr.bf16.mxu0 0
        %1474 = vmatpush1.bf16.msra.mxu0 %v1443
        %1475 = vmatprep.subr.bf16.mxu0 0
        %1476 = vmatpush2.bf16.msra.mxu0 0
        %1477 = vmatprep.subr.bf16.mxu0 0
        %1478 = vmatpush2.bf16.msra.mxu0 0
        %1479 = vmatprep.subr.bf16.mxu0 0
        %1480 = vmatpush2.bf16.msra.mxu0 0
        %1481 = vmatprep.subr.bf16.mxu0 0
        %1482 = vmatpush2.bf16.msra.mxu0 0
        %1483 = vmatprep.subr.bf16.mxu0 0
        %1484 = vmatpush2.bf16.msra.mxu0 0
        %1485 = vmatprep.subr.bf16.mxu0 0
        %1486 = vmatpush2.bf16.msra.mxu0 0
        %1487 = vmatprep.subr.bf16.mxu0 0
        %1488 = vmatpush2.bf16.msra.mxu0 0
        %1489 = vmatprep.subr.bf16.mxu0 0
        %1490 = vmatpush2.bf16.msra.mxu0 0
        %1491 = vmatprep.mubr.bf16.mxu0 0
        %1492 = vmatmul.mubr.bf16.gmra.mxu0 %v1454
        %v1493 = vpop.f32.mrf.mxu0
        %v1494 = vadd.f32 0.0, %v1493
        %v1495 = vpop.f32.mrf.mxu0
        %v1496 = vpop.f32.mrf.mxu0
        %v1497 = vadd.f32 0.0, %v1496
        %v1498 = vpop.f32.mrf.mxu0
        %1499 = vmatprep.mubr.bf16.mxu0 0
        %1500 = vmatmul.mubr.bf16.gmra.mxu0 %v1457
        %v1501 = vpop.f32.mrf.mxu0
        %v1502 = vadd.f32 0.0, %v1501
        %v1503 = vpop.f32.mrf.mxu0
        %v1504 = vpop.f32.mrf.mxu0
        %v1505 = vadd.f32 0.0, %v1504
        %v1506 = vpop.f32.mrf.mxu0
        %1507 = vdwg.mxu0
        %vm1508 = vcmp.ge.s32.totalorder %v238, 16
        %v1509 = vsel %vm1508, 1, 0
        %v1510 = vcvt.s32.f32 %v1509
        %v1512 = vlaneseq
        %v1513 = vshrl.u32 %v1512, 7
        %v1514 = vsub.s32 0, %v1513
        %v1515 = vrot.slane %v1510, %v1514
        %v1517 = vmul.f32 %v1395, %v1515
        %v1518 = vmul.f32 %v1398, %v1515
        %v1519 = vmul.f32 %v1403, %v1515
        %v1520 = vmul.f32 %v1406, %v1515
        %v1521 = vadd.f32 %v1517, %v1494
        %v1522 = vadd.f32 %v1518, %v1497
        %v1523 = vadd.f32 %v1519, %v1502
        %v1524 = vadd.f32 %v1520, %v1505
        %v1525 = vld [vmem:[%s4 + $0x80] sm:$0xff]
        %v1526 = vld [vmem:[%s4 + $0x88] sm:$0xff]
        %v1527 = vld [vmem:[%s4 + $0x90] sm:$0xff]
        %v1528 = vld [vmem:[%s4 + $0x98] sm:$0xff]
        %1530 = vset.pattern.permute.xlu0 0
        %1531 = vperm.xlu0 %1530, %v1525
        %v1532 = vpop.permute.xlu0 %1531
        %1535 = vset.pattern.permute.xlu0 0
        %1536 = vperm.xlu0 %1535, %v1526
        %v1537 = vpop.permute.xlu0 %1536
        %1540 = vset.pattern.permute.xlu0 0
        %1541 = vperm.xlu0 %1540, %v1527
        %v1542 = vpop.permute.xlu0 %1541
        %1545 = vset.pattern.permute.xlu0 0
        %1546 = vperm.xlu0 %1545, %v1528
        %v1547 = vpop.permute.xlu0 %1546
        %v1549 = vadd.f32 %v1521, %v1532
        %v1550 = vadd.f32 %v1522, %v1537
        %v1551 = vadd.f32 %v1523, %v1542
        %v1552 = vadd.f32 %v1524, %v1547
        %v1553 = vtanh.pop %v1549
        %v1554 = vtanh.pop %v1550
        %v1555 = vxor.u32 %v1551, 2147483648
        %v1556 = vxor.u32 %v1552, 2147483648
        %v1557 = vmul.f32 %v1555, 1.442695
        %v1558 = vpow.pop %v1557
        %v1559 = vmul.f32 %v1556, 1.442695
        %v1560 = vpow.pop %v1559
        %v1561 = vadd.f32 %v1558, 1.0
        %v1562 = vadd.f32 %v1560, 1.0
        %v1563 = vrcp.pop %v1561
        %v1564 = vmul.f32 1.0, %v1563
        %v1565 = vrcp.pop %v1562
        %v1566 = vmul.f32 1.0, %v1565
        %v1567 = vmul.f32 %v1553, %v1564
        %v1568 = vmul.f32 %v1554, %v1566
        %1569 = vst [vmem:[%s217 + $0x50] sm:$0xff] %v1567
        %1570 = vst [vmem:[%s217 + $0x58] sm:$0xff] %v1568
        %v1571 = vpack.c.bf16 %v1568, %v1567
        %v1573 = vunpack.c.l.b16 %v1571
        %v1574 = vunpack.c.h.b16 %v1571
        %v1575 = vpack.c.b16 %v1573, %v1573
        %v1576 = vpack.c.b16 %v1574, %v1574
        %1579 = vst [vmem:[#allocation2 + $0x28] sm:$0xf] %v1575
        %1580 = vst [vmem:[#allocation2 + $0x2c] sm:$0xf] %v1576
        %v1581 = vld [vmem:[%s217] sm:$0xff]
        %v1582 = vld [vmem:[%s217 + $0x8] sm:$0xff]
        %v1583 = vld [vmem:[%s217 + $0x10] sm:$0xff]
        %v1584 = vld [vmem:[%s217 + $0x18] sm:$0xff]
        %v1585 = vld [vmem:[%s217 + $0x20] sm:$0xff]
        %v1586 = vld [vmem:[%s217 + $0x28] sm:$0xff]
        %v1587 = vld [vmem:[%s217 + $0x30] sm:$0xff]
        %v1588 = vld [vmem:[%s217 + $0x38] sm:$0xff]
        %v1589 = vld [vmem:[%s217 + $0x40] sm:$0xff]
        %v1590 = vld [vmem:[%s217 + $0x48] sm:$0xff]
        %v1591 = vld [vmem:[%s217 + $0x50] sm:$0xff]
        %v1592 = vld [vmem:[%s217 + $0x58] sm:$0xff]
        %1593 = vrot.lane.b32.xlu0 %v1581, 32
        %v1594 = vpop.permute.xlu0 %1593
        %1595 = vrot.lane.b32.xlu0 %v1582, 32
        %v1596 = vpop.permute.xlu0 %1595
        %1597 = vrot.lane.b32.xlu0 %v1583, 32
        %v1598 = vpop.permute.xlu0 %1597
        %1599 = vrot.lane.b32.xlu0 %v1584, 32
        %v1600 = vpop.permute.xlu0 %1599
        %1601 = vrot.lane.b32.xlu0 %v1585, 32
        %v1602 = vpop.permute.xlu0 %1601
        %1603 = vrot.lane.b32.xlu0 %v1586, 32
        %v1604 = vpop.permute.xlu0 %1603
        %1605 = vrot.lane.b32.xlu0 %v1587, 32
        %v1606 = vpop.permute.xlu0 %1605
        %1607 = vrot.lane.b32.xlu0 %v1588, 32
        %v1608 = vpop.permute.xlu0 %1607
        %1609 = vrot.lane.b32.xlu0 %v1589, 32
        %v1610 = vpop.permute.xlu0 %1609
        %1611 = vrot.lane.b32.xlu0 %v1590, 32
        %v1612 = vpop.permute.xlu0 %1611
        %1613 = vrot.lane.b32.xlu0 %v1591, 32
        %v1614 = vpop.permute.xlu0 %1613
        %1615 = vrot.lane.b32.xlu0 %v1592, 32
        %v1616 = vpop.permute.xlu0 %1615
        %v1617 = vpack.c.bf16 %v1596, %v1594
        %v1618 = vpack.c.bf16 %v1600, %v1598
        %v1619 = vpack.c.bf16 %v1604, %v1602
        %v1620 = vpack.c.bf16 %v1608, %v1606
        %v1621 = vpack.c.bf16 %v1612, %v1610
        %v1622 = vpack.c.bf16 %v1616, %v1614
        %v1623 = vld [vmem:[#allocation2] sm:$0xf]
        %v1624 = vld [vmem:[#allocation2 + $0x4] sm:$0xf]
        %v1625 = vld [vmem:[#allocation2 + $0x8] sm:$0xf]
        %v1626 = vld [vmem:[#allocation2 + $0xc] sm:$0xf]
        %v1627 = vld [vmem:[#allocation2 + $0x10] sm:$0xf]
        %v1628 = vld [vmem:[#allocation2 + $0x14] sm:$0xf]
        %v1629 = vld [vmem:[#allocation2 + $0x18] sm:$0xf]
        %v1630 = vld [vmem:[#allocation2 + $0x1c] sm:$0xf]
        %v1631 = vld [vmem:[#allocation2 + $0x20] sm:$0xf]
        %v1632 = vld [vmem:[#allocation2 + $0x24] sm:$0xf]
        %v1633 = vld [vmem:[#allocation2 + $0x28] sm:$0xf]
        %v1634 = vld [vmem:[#allocation2 + $0x2c] sm:$0xf]
        %v1635 = vld [vmem:[%s2 + $0x4] sm:$0xff]
        %v1636 = vld [vmem:[%s2 + $0x14] sm:$0xff]
        %v1637 = vld [vmem:[%s2 + $0x24] sm:$0xff]
        %v1638 = vld [vmem:[%s2 + $0x34] sm:$0xff]
        %v1639 = vld [vmem:[%s3 + $0x4] sm:$0xff]
        %v1640 = vld [vmem:[%s3 + $0x14] sm:$0xff]
        %v1641 = vld [vmem:[%s3 + $0x24] sm:$0xff]
        %v1642 = vld [vmem:[%s3 + $0x34] sm:$0xff]
        %v1647 = vunpack.c.l.b16 %v1635
        %v1648 = vunpack.c.h.b16 %v1635
        %v1649 = vunpack.c.l.b16 %v1636
        %v1650 = vunpack.c.h.b16 %v1636
        %v1651 = vunpack.c.l.b16 %v1637
        %v1652 = vunpack.c.h.b16 %v1637
        %v1653 = vunpack.c.l.b16 %v1638
        %v1654 = vunpack.c.h.b16 %v1638
        %v1655 = vpack.c.b16 %v1649, %v1647
        %v1656 = vpack.c.b16 %v1650, %v1648
        %v1657 = vpack.c.b16 %v1653, %v1651
        %v1658 = vpack.c.b16 %v1654, %v1652
        %1659 = vrot.lane.b32.xlu0 %v1655, 16
        %v1660 = vpop.permute.xlu0 %1659
        %1661 = vrot.lane.b32.xlu0 %v1656, 16
        %v1662 = vpop.permute.xlu0 %1661
        %1663 = vrot.lane.b32.xlu0 %v1657, 16
        %v1664 = vpop.permute.xlu0 %1663
        %1665 = vrot.lane.b32.xlu0 %v1658, 16
        %v1666 = vpop.permute.xlu0 %1665
        %vm1667 = vcmask 130048
        %v1668 = vsel %vm1667, %v1660, %v1662
        %v1669 = vsel %vm1667, %v1664, %v1666
        %vm1670 = vcmask 785408
        %v1672 = vsel %vm1670, %v1668, 0
        %v1675 = vsel %vm1670, %v1669, 0
        %1677 = vmatprep.subr.bf16.mxu0 0
        %1678 = vmatpush1.bf16.msra.mxu0 0
        %1679 = vmatprep.subr.bf16.mxu0 0
        %1680 = vmatpush1.bf16.msra.mxu0 0
        %1681 = vmatprep.subr.bf16.mxu0 0
        %1682 = vmatpush1.bf16.msra.mxu0 %v1622
        %1683 = vmatprep.subr.bf16.mxu0 0
        %1684 = vmatpush1.bf16.msra.mxu0 %v1621
        %1685 = vmatprep.subr.bf16.mxu0 0
        %1686 = vmatpush1.bf16.msra.mxu0 %v1620
        %1687 = vmatprep.subr.bf16.mxu0 0
        %1688 = vmatpush1.bf16.msra.mxu0 %v1619
        %1689 = vmatprep.subr.bf16.mxu0 0
        %1690 = vmatpush1.bf16.msra.mxu0 %v1618
        %1691 = vmatprep.subr.bf16.mxu0 0
        %1692 = vmatpush1.bf16.msra.mxu0 %v1617
        %1693 = vmatprep.subr.bf16.mxu0 0
        %1694 = vmatpush2.bf16.msra.mxu0 0
        %1695 = vmatprep.subr.bf16.mxu0 0
        %1696 = vmatpush2.bf16.msra.mxu0 0
        %1697 = vmatprep.subr.bf16.mxu0 0
        %1698 = vmatpush2.bf16.msra.mxu0 0
        %1699 = vmatprep.subr.bf16.mxu0 0
        %1700 = vmatpush2.bf16.msra.mxu0 0
        %1701 = vmatprep.subr.bf16.mxu0 0
        %1702 = vmatpush2.bf16.msra.mxu0 0
        %1703 = vmatprep.subr.bf16.mxu0 0
        %1704 = vmatpush2.bf16.msra.mxu0 0
        %1705 = vmatprep.subr.bf16.mxu0 0
        %1706 = vmatpush2.bf16.msra.mxu0 0
        %1707 = vmatprep.subr.bf16.mxu0 0
        %1708 = vmatpush2.bf16.msra.mxu0 0
        %1709 = vmatprep.mubr.bf16.mxu0 0
        %1710 = vmatmul.mubr.bf16.gmra.mxu0 %v1672
        %v1711 = vpop.f32.mrf.mxu0
        %v1712 = vadd.f32 0.0, %v1711
        %v1713 = vpop.f32.mrf.mxu0
        %v1714 = vpop.f32.mrf.mxu0
        %v1715 = vadd.f32 0.0, %v1714
        %v1716 = vpop.f32.mrf.mxu0
        %1717 = vmatprep.mubr.bf16.mxu0 0
        %1718 = vmatmul.mubr.bf16.gmra.mxu0 %v1675
        %v1719 = vpop.f32.mrf.mxu0
        %v1720 = vadd.f32 0.0, %v1719
        %v1721 = vpop.f32.mrf.mxu0
        %v1722 = vpop.f32.mrf.mxu0
        %v1723 = vadd.f32 0.0, %v1722
        %v1724 = vpop.f32.mrf.mxu0
        %1725 = vdwg.mxu0
        %v1730 = vunpack.c.l.b16 %v1639
        %v1731 = vunpack.c.h.b16 %v1639
        %v1732 = vunpack.c.l.b16 %v1640
        %v1733 = vunpack.c.h.b16 %v1640
        %v1734 = vunpack.c.l.b16 %v1641
        %v1735 = vunpack.c.h.b16 %v1641
        %v1736 = vunpack.c.l.b16 %v1642
        %v1737 = vunpack.c.h.b16 %v1642
        %v1738 = vpack.c.b16 %v1732, %v1730
        %v1739 = vpack.c.b16 %v1733, %v1731
        %v1740 = vpack.c.b16 %v1736, %v1734
        %v1741 = vpack.c.b16 %v1737, %v1735
        %1742 = vrot.lane.b32.xlu0 %v1738, 16
        %v1743 = vpop.permute.xlu0 %1742
        %1744 = vrot.lane.b32.xlu0 %v1739, 16
        %v1745 = vpop.permute.xlu0 %1744
        %1746 = vrot.lane.b32.xlu0 %v1740, 16
        %v1747 = vpop.permute.xlu0 %1746
        %1748 = vrot.lane.b32.xlu0 %v1741, 16
        %v1749 = vpop.permute.xlu0 %1748
        %v1750 = vsel %vm1667, %v1743, %v1745
        %v1751 = vsel %vm1667, %v1747, %v1749
        %v1764 = vunpack.c.l.b16 %v1623
        %v1765 = vunpack.c.l.b16 %v1624
        %v1766 = vunpack.c.l.b16 %v1625
        %v1767 = vunpack.c.l.b16 %v1626
        %v1768 = vunpack.c.l.b16 %v1627
        %v1769 = vunpack.c.l.b16 %v1628
        %v1770 = vunpack.c.l.b16 %v1629
        %v1771 = vunpack.c.l.b16 %v1630
        %v1772 = vunpack.c.l.b16 %v1631
        %v1773 = vunpack.c.l.b16 %v1632
        %v1774 = vunpack.c.l.b16 %v1633
        %v1775 = vunpack.c.l.b16 %v1634
        %v1776 = vpack.c.b16 %v1765, %v1764
        %v1777 = vpack.c.b16 %v1767, %v1766
        %v1778 = vpack.c.b16 %v1769, %v1768
        %v1779 = vpack.c.b16 %v1771, %v1770
        %v1780 = vpack.c.b16 %v1773, %v1772
        %v1781 = vpack.c.b16 %v1775, %v1774
        %v1789 = vsel %vm1670, %v1750, 0
        %v1792 = vsel %vm1670, %v1751, 0
        %1794 = vmatprep.subr.bf16.mxu0 0
        %1795 = vmatpush1.bf16.msra.mxu0 0
        %1796 = vmatprep.subr.bf16.mxu0 0
        %1797 = vmatpush1.bf16.msra.mxu0 0
        %1798 = vmatprep.subr.bf16.mxu0 0
        %1799 = vmatpush1.bf16.msra.mxu0 %v1781
        %1800 = vmatprep.subr.bf16.mxu0 0
        %1801 = vmatpush1.bf16.msra.mxu0 %v1780
        %1802 = vmatprep.subr.bf16.mxu0 0
        %1803 = vmatpush1.bf16.msra.mxu0 %v1779
        %1804 = vmatprep.subr.bf16.mxu0 0
        %1805 = vmatpush1.bf16.msra.mxu0 %v1778
        %1806 = vmatprep.subr.bf16.mxu0 0
        %1807 = vmatpush1.bf16.msra.mxu0 %v1777
        %1808 = vmatprep.subr.bf16.mxu0 0
        %1809 = vmatpush1.bf16.msra.mxu0 %v1776
        %1810 = vmatprep.subr.bf16.mxu0 0
        %1811 = vmatpush2.bf16.msra.mxu0 0
        %1812 = vmatprep.subr.bf16.mxu0 0
        %1813 = vmatpush2.bf16.msra.mxu0 0
        %1814 = vmatprep.subr.bf16.mxu0 0
        %1815 = vmatpush2.bf16.msra.mxu0 0
        %1816 = vmatprep.subr.bf16.mxu0 0
        %1817 = vmatpush2.bf16.msra.mxu0 0
        %1818 = vmatprep.subr.bf16.mxu0 0
        %1819 = vmatpush2.bf16.msra.mxu0 0
        %1820 = vmatprep.subr.bf16.mxu0 0
        %1821 = vmatpush2.bf16.msra.mxu0 0
        %1822 = vmatprep.subr.bf16.mxu0 0
        %1823 = vmatpush2.bf16.msra.mxu0 0
        %1824 = vmatprep.subr.bf16.mxu0 0
        %1825 = vmatpush2.bf16.msra.mxu0 0
        %1826 = vmatprep.mubr.bf16.mxu0 0
        %1827 = vmatmul.mubr.bf16.gmra.mxu0 %v1789
        %v1828 = vpop.f32.mrf.mxu0
        %v1829 = vadd.f32 0.0, %v1828
        %v1830 = vpop.f32.mrf.mxu0
        %v1831 = vpop.f32.mrf.mxu0
        %v1832 = vadd.f32 0.0, %v1831
        %v1833 = vpop.f32.mrf.mxu0
        %1834 = vmatprep.mubr.bf16.mxu0 0
        %1835 = vmatmul.mubr.bf16.gmra.mxu0 %v1792
        %v1836 = vpop.f32.mrf.mxu0
        %v1837 = vadd.f32 0.0, %v1836
        %v1838 = vpop.f32.mrf.mxu0
        %v1839 = vpop.f32.mrf.mxu0
        %v1840 = vadd.f32 0.0, %v1839
        %v1841 = vpop.f32.mrf.mxu0
        %1842 = vdwg.mxu0
        %vm1843 = vcmp.ge.s32.totalorder %v238, 32
        %v1844 = vsel %vm1843, 1, 0
        %v1845 = vcvt.s32.f32 %v1844
        %v1847 = vlaneseq
        %v1848 = vshrl.u32 %v1847, 7
        %v1849 = vsub.s32 0, %v1848
        %v1850 = vrot.slane %v1845, %v1849
        %v1852 = vmul.f32 %v1712, %v1850
        %v1853 = vmul.f32 %v1715, %v1850
        %v1854 = vmul.f32 %v1720, %v1850
        %v1855 = vmul.f32 %v1723, %v1850
        %v1856 = vadd.f32 %v1852, %v1829
        %v1857 = vadd.f32 %v1853, %v1832
        %v1858 = vadd.f32 %v1854, %v1837
        %v1859 = vadd.f32 %v1855, %v1840
        %v1860 = vld [vmem:[%s4 + $0xa0] sm:$0xff]
        %v1861 = vld [vmem:[%s4 + $0xa8] sm:$0xff]
        %v1862 = vld [vmem:[%s4 + $0xb0] sm:$0xff]
        %v1863 = vld [vmem:[%s4 + $0xb8] sm:$0xff]
        %1865 = vset.pattern.permute.xlu0 0
        %1866 = vperm.xlu0 %1865, %v1860
        %v1867 = vpop.permute.xlu0 %1866
        %1870 = vset.pattern.permute.xlu0 0
        %1871 = vperm.xlu0 %1870, %v1861
        %v1872 = vpop.permute.xlu0 %1871
        %1875 = vset.pattern.permute.xlu0 0
        %1876 = vperm.xlu0 %1875, %v1862
        %v1877 = vpop.permute.xlu0 %1876
        %1880 = vset.pattern.permute.xlu0 0
        %1881 = vperm.xlu0 %1880, %v1863
        %v1882 = vpop.permute.xlu0 %1881
        %v1884 = vadd.f32 %v1856, %v1867
        %v1885 = vadd.f32 %v1857, %v1872
        %v1886 = vadd.f32 %v1858, %v1877
        %v1887 = vadd.f32 %v1859, %v1882
        %v1888 = vtanh.pop %v1884
        %v1889 = vtanh.pop %v1885
        %v1890 = vxor.u32 %v1886, 2147483648
        %v1891 = vxor.u32 %v1887, 2147483648
        %v1892 = vmul.f32 %v1890, 1.442695
        %v1893 = vpow.pop %v1892
        %v1894 = vmul.f32 %v1891, 1.442695
        %v1895 = vpow.pop %v1894
        %v1896 = vadd.f32 %v1893, 1.0
        %v1897 = vadd.f32 %v1895, 1.0
        %v1898 = vrcp.pop %v1896
        %v1899 = vmul.f32 1.0, %v1898
        %v1900 = vrcp.pop %v1897
        %v1901 = vmul.f32 1.0, %v1900
        %v1902 = vmul.f32 %v1888, %v1899
        %v1903 = vmul.f32 %v1889, %v1901
        %1904 = vst [vmem:[%s217 + $0x60] sm:$0xff] %v1902
        %1905 = vst [vmem:[%s217 + $0x68] sm:$0xff] %v1903
        %v1906 = vpack.c.bf16 %v1903, %v1902
        %v1908 = vunpack.c.l.b16 %v1906
        %v1909 = vunpack.c.h.b16 %v1906
        %v1910 = vpack.c.b16 %v1908, %v1908
        %v1911 = vpack.c.b16 %v1909, %v1909
        %1914 = vst [vmem:[#allocation2 + $0x30] sm:$0xf] %v1910
        %1915 = vst [vmem:[#allocation2 + $0x34] sm:$0xf] %v1911
        %v1916 = vld [vmem:[%s217] sm:$0xff]
        %v1917 = vld [vmem:[%s217 + $0x8] sm:$0xff]
        %v1918 = vld [vmem:[%s217 + $0x10] sm:$0xff]
        %v1919 = vld [vmem:[%s217 + $0x18] sm:$0xff]
        %v1920 = vld [vmem:[%s217 + $0x20] sm:$0xff]
        %v1921 = vld [vmem:[%s217 + $0x28] sm:$0xff]
        %v1922 = vld [vmem:[%s217 + $0x30] sm:$0xff]
        %v1923 = vld [vmem:[%s217 + $0x38] sm:$0xff]
        %v1924 = vld [vmem:[%s217 + $0x40] sm:$0xff]
        %v1925 = vld [vmem:[%s217 + $0x48] sm:$0xff]
        %v1926 = vld [vmem:[%s217 + $0x50] sm:$0xff]
        %v1927 = vld [vmem:[%s217 + $0x58] sm:$0xff]
        %v1928 = vld [vmem:[%s217 + $0x60] sm:$0xff]
        %v1929 = vld [vmem:[%s217 + $0x68] sm:$0xff]
        %1930 = vrot.lane.b32.xlu0 %v1916, 64
        %v1931 = vpop.permute.xlu0 %1930
        %1932 = vrot.lane.b32.xlu0 %v1917, 64
        %v1933 = vpop.permute.xlu0 %1932
        %1934 = vrot.lane.b32.xlu0 %v1918, 64
        %v1935 = vpop.permute.xlu0 %1934
        %1936 = vrot.lane.b32.xlu0 %v1919, 64
        %v1937 = vpop.permute.xlu0 %1936
        %1938 = vrot.lane.b32.xlu0 %v1920, 64
        %v1939 = vpop.permute.xlu0 %1938
        %1940 = vrot.lane.b32.xlu0 %v1921, 64
        %v1941 = vpop.permute.xlu0 %1940
        %1942 = vrot.lane.b32.xlu0 %v1922, 64
        %v1943 = vpop.permute.xlu0 %1942
        %1944 = vrot.lane.b32.xlu0 %v1923, 64
        %v1945 = vpop.permute.xlu0 %1944
        %1946 = vrot.lane.b32.xlu0 %v1924, 64
        %v1947 = vpop.permute.xlu0 %1946
        %1948 = vrot.lane.b32.xlu0 %v1925, 64
        %v1949 = vpop.permute.xlu0 %1948
        %1950 = vrot.lane.b32.xlu0 %v1926, 64
        %v1951 = vpop.permute.xlu0 %1950
        %1952 = vrot.lane.b32.xlu0 %v1927, 64
        %v1953 = vpop.permute.xlu0 %1952
        %1954 = vrot.lane.b32.xlu0 %v1928, 64
        %v1955 = vpop.permute.xlu0 %1954
        %1956 = vrot.lane.b32.xlu0 %v1929, 64
        %v1957 = vpop.permute.xlu0 %1956
        %v1958 = vpack.c.bf16 %v1933, %v1931
        %v1959 = vpack.c.bf16 %v1937, %v1935
        %v1960 = vpack.c.bf16 %v1941, %v1939
        %v1961 = vpack.c.bf16 %v1945, %v1943
        %v1962 = vpack.c.bf16 %v1949, %v1947
        %v1963 = vpack.c.bf16 %v1953, %v1951
        %v1964 = vpack.c.bf16 %v1957, %v1955
        %v1965 = vld [vmem:[#allocation2] sm:$0xf]
        %v1966 = vld [vmem:[#allocation2 + $0x4] sm:$0xf]
        %v1967 = vld [vmem:[#allocation2 + $0x8] sm:$0xf]
        %v1968 = vld [vmem:[#allocation2 + $0xc] sm:$0xf]
        %v1969 = vld [vmem:[#allocation2 + $0x10] sm:$0xf]
        %v1970 = vld [vmem:[#allocation2 + $0x14] sm:$0xf]
        %v1971 = vld [vmem:[#allocation2 + $0x18] sm:$0xf]
        %v1972 = vld [vmem:[#allocation2 + $0x1c] sm:$0xf]
        %v1973 = vld [vmem:[#allocation2 + $0x20] sm:$0xf]
        %v1974 = vld [vmem:[#allocation2 + $0x24] sm:$0xf]
        %v1975 = vld [vmem:[#allocation2 + $0x28] sm:$0xf]
        %v1976 = vld [vmem:[#allocation2 + $0x2c] sm:$0xf]
        %v1977 = vld [vmem:[#allocation2 + $0x30] sm:$0xf]
        %v1978 = vld [vmem:[#allocation2 + $0x34] sm:$0xf]
        %v1979 = vld [vmem:[%s2 + $0x8] sm:$0xff]
        %v1980 = vld [vmem:[%s2 + $0x18] sm:$0xff]
        %v1981 = vld [vmem:[%s2 + $0x28] sm:$0xff]
        %v1982 = vld [vmem:[%s2 + $0x38] sm:$0xff]
        %v1983 = vld [vmem:[%s3 + $0x8] sm:$0xff]
        %v1984 = vld [vmem:[%s3 + $0x18] sm:$0xff]
        %v1985 = vld [vmem:[%s3 + $0x28] sm:$0xff]
        %v1986 = vld [vmem:[%s3 + $0x38] sm:$0xff]
        %v1991 = vunpack.c.l.b16 %v1979
        %v1992 = vunpack.c.h.b16 %v1979
        %v1993 = vunpack.c.l.b16 %v1980
        %v1994 = vunpack.c.h.b16 %v1980
        %v1995 = vunpack.c.l.b16 %v1981
        %v1996 = vunpack.c.h.b16 %v1981
        %v1997 = vunpack.c.l.b16 %v1982
        %v1998 = vunpack.c.h.b16 %v1982
        %v1999 = vpack.c.b16 %v1993, %v1991
        %v2000 = vpack.c.b16 %v1994, %v1992
        %v2001 = vpack.c.b16 %v1997, %v1995
        %v2002 = vpack.c.b16 %v1998, %v1996
        %2003 = vrot.lane.b32.xlu0 %v1999, 48
        %v2004 = vpop.permute.xlu0 %2003
        %2005 = vrot.lane.b32.xlu0 %v2000, 48
        %v2006 = vpop.permute.xlu0 %2005
        %2007 = vrot.lane.b32.xlu0 %v2001, 48
        %v2008 = vpop.permute.xlu0 %2007
        %2009 = vrot.lane.b32.xlu0 %v2002, 48
        %v2010 = vpop.permute.xlu0 %2009
        %vm2011 = vcmask 392192
        %v2012 = vsel %vm2011, %v2004, %v2006
        %v2013 = vsel %vm2011, %v2008, %v2010
        %vm2014 = vcmask 916480
        %v2016 = vsel %vm2014, %v2012, 0
        %v2019 = vsel %vm2014, %v2013, 0
        %2021 = vmatprep.subr.bf16.mxu0 0
        %2022 = vmatpush1.bf16.msra.mxu0 0
        %2023 = vmatprep.subr.bf16.mxu0 0
        %2024 = vmatpush1.bf16.msra.mxu0 %v1964
        %2025 = vmatprep.subr.bf16.mxu0 0
        %2026 = vmatpush1.bf16.msra.mxu0 %v1963
        %2027 = vmatprep.subr.bf16.mxu0 0
        %2028 = vmatpush1.bf16.msra.mxu0 %v1962
        %2029 = vmatprep.subr.bf16.mxu0 0
        %2030 = vmatpush1.bf16.msra.mxu0 %v1961
        %2031 = vmatprep.subr.bf16.mxu0 0
        %2032 = vmatpush1.bf16.msra.mxu0 %v1960
        %2033 = vmatprep.subr.bf16.mxu0 0
        %2034 = vmatpush1.bf16.msra.mxu0 %v1959
        %2035 = vmatprep.subr.bf16.mxu0 0
        %2036 = vmatpush1.bf16.msra.mxu0 %v1958
        %2037 = vmatprep.subr.bf16.mxu0 0
        %2038 = vmatpush2.bf16.msra.mxu0 0
        %2039 = vmatprep.subr.bf16.mxu0 0
        %2040 = vmatpush2.bf16.msra.mxu0 0
        %2041 = vmatprep.subr.bf16.mxu0 0
        %2042 = vmatpush2.bf16.msra.mxu0 0
        %2043 = vmatprep.subr.bf16.mxu0 0
        %2044 = vmatpush2.bf16.msra.mxu0 0
        %2045 = vmatprep.subr.bf16.mxu0 0
        %2046 = vmatpush2.bf16.msra.mxu0 0
        %2047 = vmatprep.subr.bf16.mxu0 0
        %2048 = vmatpush2.bf16.msra.mxu0 0
        %2049 = vmatprep.subr.bf16.mxu0 0
        %2050 = vmatpush2.bf16.msra.mxu0 0
        %2051 = vmatprep.subr.bf16.mxu0 0
        %2052 = vmatpush2.bf16.msra.mxu0 0
        %2053 = vmatprep.mubr.bf16.mxu0 0
        %2054 = vmatmul.mubr.bf16.gmra.mxu0 %v2016
        %v2055 = vpop.f32.mrf.mxu0
        %v2056 = vadd.f32 0.0, %v2055
        %v2057 = vpop.f32.mrf.mxu0
        %v2058 = vpop.f32.mrf.mxu0
        %v2059 = vadd.f32 0.0, %v2058
        %v2060 = vpop.f32.mrf.mxu0
        %2061 = vmatprep.mubr.bf16.mxu0 0
        %2062 = vmatmul.mubr.bf16.gmra.mxu0 %v2019
        %v2063 = vpop.f32.mrf.mxu0
        %v2064 = vadd.f32 0.0, %v2063
        %v2065 = vpop.f32.mrf.mxu0
        %v2066 = vpop.f32.mrf.mxu0
        %v2067 = vadd.f32 0.0, %v2066
        %v2068 = vpop.f32.mrf.mxu0
        %2069 = vdwg.mxu0
        %v2074 = vunpack.c.l.b16 %v1983
        %v2075 = vunpack.c.h.b16 %v1983
        %v2076 = vunpack.c.l.b16 %v1984
        %v2077 = vunpack.c.h.b16 %v1984
        %v2078 = vunpack.c.l.b16 %v1985
        %v2079 = vunpack.c.h.b16 %v1985
        %v2080 = vunpack.c.l.b16 %v1986
        %v2081 = vunpack.c.h.b16 %v1986
        %v2082 = vpack.c.b16 %v2076, %v2074
        %v2083 = vpack.c.b16 %v2077, %v2075
        %v2084 = vpack.c.b16 %v2080, %v2078
        %v2085 = vpack.c.b16 %v2081, %v2079
        %2086 = vrot.lane.b32.xlu0 %v2082, 48
        %v2087 = vpop.permute.xlu0 %2086
        %2088 = vrot.lane.b32.xlu0 %v2083, 48
        %v2089 = vpop.permute.xlu0 %2088
        %2090 = vrot.lane.b32.xlu0 %v2084, 48
        %v2091 = vpop.permute.xlu0 %2090
        %2092 = vrot.lane.b32.xlu0 %v2085, 48
        %v2093 = vpop.permute.xlu0 %2092
        %v2094 = vsel %vm2011, %v2087, %v2089
        %v2095 = vsel %vm2011, %v2091, %v2093
        %v2110 = vunpack.c.l.b16 %v1965
        %v2111 = vunpack.c.l.b16 %v1966
        %v2112 = vunpack.c.l.b16 %v1967
        %v2113 = vunpack.c.l.b16 %v1968
        %v2114 = vunpack.c.l.b16 %v1969
        %v2115 = vunpack.c.l.b16 %v1970
        %v2116 = vunpack.c.l.b16 %v1971
        %v2117 = vunpack.c.l.b16 %v1972
        %v2118 = vunpack.c.l.b16 %v1973
        %v2119 = vunpack.c.l.b16 %v1974
        %v2120 = vunpack.c.l.b16 %v1975
        %v2121 = vunpack.c.l.b16 %v1976
        %v2122 = vunpack.c.l.b16 %v1977
        %v2123 = vunpack.c.l.b16 %v1978
        %v2124 = vpack.c.b16 %v2111, %v2110
        %v2125 = vpack.c.b16 %v2113, %v2112
        %v2126 = vpack.c.b16 %v2115, %v2114
        %v2127 = vpack.c.b16 %v2117, %v2116
        %v2128 = vpack.c.b16 %v2119, %v2118
        %v2129 = vpack.c.b16 %v2121, %v2120
        %v2130 = vpack.c.b16 %v2123, %v2122
        %v2139 = vsel %vm2014, %v2094, 0
        %v2142 = vsel %vm2014, %v2095, 0
        %2144 = vmatprep.subr.bf16.mxu0 0
        %2145 = vmatpush1.bf16.msra.mxu0 0
        %2146 = vmatprep.subr.bf16.mxu0 0
        %2147 = vmatpush1.bf16.msra.mxu0 %v2130
        %2148 = vmatprep.subr.bf16.mxu0 0
        %2149 = vmatpush1.bf16.msra.mxu0 %v2129
        %2150 = vmatprep.subr.bf16.mxu0 0
        %2151 = vmatpush1.bf16.msra.mxu0 %v2128
        %2152 = vmatprep.subr.bf16.mxu0 0
        %2153 = vmatpush1.bf16.msra.mxu0 %v2127
        %2154 = vmatprep.subr.bf16.mxu0 0
        %2155 = vmatpush1.bf16.msra.mxu0 %v2126
        %2156 = vmatprep.subr.bf16.mxu0 0
        %2157 = vmatpush1.bf16.msra.mxu0 %v2125
        %2158 = vmatprep.subr.bf16.mxu0 0
        %2159 = vmatpush1.bf16.msra.mxu0 %v2124
        %2160 = vmatprep.subr.bf16.mxu0 0
        %2161 = vmatpush2.bf16.msra.mxu0 0
        %2162 = vmatprep.subr.bf16.mxu0 0
        %2163 = vmatpush2.bf16.msra.mxu0 0
        %2164 = vmatprep.subr.bf16.mxu0 0
        %2165 = vmatpush2.bf16.msra.mxu0 0
        %2166 = vmatprep.subr.bf16.mxu0 0
        %2167 = vmatpush2.bf16.msra.mxu0 0
        %2168 = vmatprep.subr.bf16.mxu0 0
        %2169 = vmatpush2.bf16.msra.mxu0 0
        %2170 = vmatprep.subr.bf16.mxu0 0
        %2171 = vmatpush2.bf16.msra.mxu0 0
        %2172 = vmatprep.subr.bf16.mxu0 0
        %2173 = vmatpush2.bf16.msra.mxu0 0
        %2174 = vmatprep.subr.bf16.mxu0 0
        %2175 = vmatpush2.bf16.msra.mxu0 0
        %2176 = vmatprep.mubr.bf16.mxu0 0
        %2177 = vmatmul.mubr.bf16.gmra.mxu0 %v2139
        %v2178 = vpop.f32.mrf.mxu0
        %v2179 = vadd.f32 0.0, %v2178
        %v2180 = vpop.f32.mrf.mxu0
        %v2181 = vpop.f32.mrf.mxu0
        %v2182 = vadd.f32 0.0, %v2181
        %v2183 = vpop.f32.mrf.mxu0
        %2184 = vmatprep.mubr.bf16.mxu0 0
        %2185 = vmatmul.mubr.bf16.gmra.mxu0 %v2142
        %v2186 = vpop.f32.mrf.mxu0
        %v2187 = vadd.f32 0.0, %v2186
        %v2188 = vpop.f32.mrf.mxu0
        %v2189 = vpop.f32.mrf.mxu0
        %v2190 = vadd.f32 0.0, %v2189
        %v2191 = vpop.f32.mrf.mxu0
        %2192 = vdwg.mxu0
        %vm2193 = vcmp.ge.s32.totalorder %v238, 64
        %v2194 = vsel %vm2193, 1, 0
        %v2195 = vcvt.s32.f32 %v2194
        %v2197 = vlaneseq
        %v2198 = vshrl.u32 %v2197, 7
        %v2199 = vsub.s32 0, %v2198
        %v2200 = vrot.slane %v2195, %v2199
        %v2202 = vmul.f32 %v2056, %v2200
        %v2203 = vmul.f32 %v2059, %v2200
        %v2204 = vmul.f32 %v2064, %v2200
        %v2205 = vmul.f32 %v2067, %v2200
        %v2206 = vadd.f32 %v2202, %v2179
        %v2207 = vadd.f32 %v2203, %v2182
        %v2208 = vadd.f32 %v2204, %v2187
        %v2209 = vadd.f32 %v2205, %v2190
        %v2210 = vld [vmem:[%s4 + $0xc0] sm:$0xff]
        %v2211 = vld [vmem:[%s4 + $0xc8] sm:$0xff]
        %v2212 = vld [vmem:[%s4 + $0xd0] sm:$0xff]
        %v2213 = vld [vmem:[%s4 + $0xd8] sm:$0xff]
        %2215 = vset.pattern.permute.xlu0 0
        %2216 = vperm.xlu0 %2215, %v2210
        %v2217 = vpop.permute.xlu0 %2216
        %2220 = vset.pattern.permute.xlu0 0
        %2221 = vperm.xlu0 %2220, %v2211
        %v2222 = vpop.permute.xlu0 %2221
        %2225 = vset.pattern.permute.xlu0 0
        %2226 = vperm.xlu0 %2225, %v2212
        %v2227 = vpop.permute.xlu0 %2226
        %2230 = vset.pattern.permute.xlu0 0
        %2231 = vperm.xlu0 %2230, %v2213
        %v2232 = vpop.permute.xlu0 %2231
        %v2234 = vadd.f32 %v2206, %v2217
        %v2235 = vadd.f32 %v2207, %v2222
        %v2236 = vadd.f32 %v2208, %v2227
        %v2237 = vadd.f32 %v2209, %v2232
        %v2238 = vtanh.pop %v2234
        %v2239 = vtanh.pop %v2235
        %v2240 = vxor.u32 %v2236, 2147483648
        %v2241 = vxor.u32 %v2237, 2147483648
        %v2242 = vmul.f32 %v2240, 1.442695
        %v2243 = vpow.pop %v2242
        %v2244 = vmul.f32 %v2241, 1.442695
        %v2245 = vpow.pop %v2244
        %v2246 = vadd.f32 %v2243, 1.0
        %v2247 = vadd.f32 %v2245, 1.0
        %v2248 = vrcp.pop %v2246
        %v2249 = vmul.f32 1.0, %v2248
        %v2250 = vrcp.pop %v2247
        %v2251 = vmul.f32 1.0, %v2250
        %v2252 = vmul.f32 %v2238, %v2249
        %v2253 = vmul.f32 %v2239, %v2251
        %2254 = vst [vmem:[%s217 + $0x70] sm:$0xff] %v2252
        %2255 = vst [vmem:[%s217 + $0x78] sm:$0xff] %v2253
        %v2256 = vpack.c.bf16 %v2253, %v2252
        %v2258 = vunpack.c.l.b16 %v2256
        %v2259 = vunpack.c.h.b16 %v2256
        %v2260 = vpack.c.b16 %v2258, %v2258
        %v2261 = vpack.c.b16 %v2259, %v2259
        %2264 = vst [vmem:[#allocation2 + $0x38] sm:$0xf] %v2260
        %2265 = vst [vmem:[#allocation2 + $0x3c] sm:$0xf] %v2261
        %s2266 = sand.u32 %s137, 1
        %s2267 = scalar_lea.sflag [#allocation4], %s2266
        %s2268 = sand.u32 %s137, 1
        %s2269 = smul.addr %s2268, 128
        %s2270 = scalar_lea.vmem [#allocation3], %s2269
        // Predicated region
        $region41: #{tpu_custom_call.1} parent=39 // pred_check
          %p2271 = pneg %p147
        $region42: #{tpu_custom_call.1} parent=39 // pred_check_branch
          %2273 = sbr.rel (%p2271) target = $region44
        $region43: #{tpu_custom_call.1} parent=39 // pred_region
          %s2275 = ssub.s32 2048, 2048
          %2276 = vsyncadd %s2267, %s2275
          %s2277 = smul.addr %s19, 16
          %s2278 = smul.addr %s2277, 128
          %s2279 = scalar_lea.hbm %s5, %s2278
          %s2280 = sshll.u32 %s2270, 4
          %s2281 = int_to_ptr.vmem [resolvable:$true] %s2280
          %2286 = dma.vmem_to_hbm [thread:$0]  %s2281, 2048, %s2279, %s2267, 128, 128, 8
        $region44: #{tpu_custom_call.1} parent=39 // pred_fallthru
          _
      $region40: #{tpu_custom_call.1} parent=5 // pred_fallthru
        _
      %p2287 = scmp.le.s32.totalorder 2, %s14
      // Predicated region
      $region45: #{tpu_custom_call.1} parent=5 // pred_check
        %p2288 = pneg %p2287
      $region46: #{tpu_custom_call.1} parent=5 // pred_check_branch
        %2290 = sbr.rel (%p2288) target = $region48
      $region47: #{tpu_custom_call.1} parent=5 // pred_region
        %s2291 = ssub.s32 %s14, 2
        // Predicated region
        $region49: #{tpu_custom_call.1} parent=47 // pred_check
          %p2292 = pneg %p153
        $region50: #{tpu_custom_call.1} parent=47 // pred_check_branch
          %2294 = sbr.rel (%p2292) target = $region52
        $region51: #{tpu_custom_call.1} parent=47 // pred_region
          %s2295 = sand.u32 %s138, 1
          %s2296 = scalar_lea.sflag [#allocation4], %s2295
          %s2297 = sand.u32 %s138, 1
          %s2298 = smul.addr %s2297, 128
          %s2299 = scalar_lea.vmem [#allocation3], %s2298
          %2300 = dma.done %s2296, 2048
        $region52: #{tpu_custom_call.1} parent=47 // pred_fallthru
          _
      $region48: #{tpu_custom_call.1} parent=5 // pred_fallthru
        _
    $region6: #{tpu_custom_call.1} parent=1 // loop_footer
      %s18 = sadd.s32 1, %s14
    $region7: #{tpu_custom_call.1} parent=1 // loop_footer_branch
      %13 = sbr.rel target = $region3
    $region8: #{tpu_custom_call.1} parent=1 // loop_exit
      _
    %2301 = vsyncpa [#allocation4], 1
    %s2302 = scalar_lea.sflag [#allocation4], 1
    %2303 = vsyncpa %s2302, 1

</llo_original>
